<compile_context>
chip_gen: v7x
topology: tpu7x:2x2x1
jax: 0.10.0
libtpu: 0.0.40
codegen_flags: <defaults>
</compile_context>

<pallas_src>
import functools
import numpy as np
import jax
import jax.numpy as jnp
from jax.experimental import pallas as pl
from jax.experimental.pallas import tpu as pltpu


def _ulink_kernel(xp_ref, mask_ref, wl_ref, w1_ref, w2_ref, wc_ref, wt_ref,
                  b_ref, out_ref, *, cpad, wpad, lanes):
    # Activations live in a "padded-flat, batch-folded" layout (C, lanes): pixel
    # (i, j) of image b sits at lane b*pt + (i+1)*wpad + (j+1).
    f32 = jnp.float32
    interior = mask_ref[...]                      # (1, lanes): 1.0 on valid pixels

    def s3(p):
        # (C, lanes) zero-border padded-flat -> (3C, lanes): dw = -1, 0, +1 taps.
        # slab_dw[L] = p[L + dw]; the +-1 lane rolls stay within a padded row for
        # every lane that is ever read back, so image seams never leak in.
        return jnp.concatenate(
            [pltpu.roll(p, shift=1, axis=1), p,
             pltpu.roll(p, shift=lanes - 1, axis=1)], axis=0)

    def conv3(w_ref, p):
        # 3x3 conv (or 4x4/s2 deconv phase block) as three (O, 3C) matmuls on the
        # dw-stack, folding the dh taps back in with output-side lane rolls:
        #   out[L] = P_0[L] + P_{-1}[L - wpad] + P_{+1}[L + wpad]
        s = s3(p)
        pm = jnp.dot(w_ref[0], s, preferred_element_type=f32)     # dh = -1
        p0 = jnp.dot(w_ref[1], s, preferred_element_type=f32)     # dh =  0
        pp = jnp.dot(w_ref[2], s, preferred_element_type=f32)     # dh = +1
        return (p0 + pltpu.roll(pm, shift=wpad, axis=1)
                + pltpu.roll(pp, shift=lanes - wpad, axis=1))

    xp = xp_ref[0]                                # (4*cpad, lanes): 2x2 phases of x
    # AvgPool2d(2, 2): mean of the four pre-split phases (8-sublane aligned slices).
    xh = 0.25 * (xp[0:cpad] + xp[cpad:2 * cpad]
                 + xp[2 * cpad:3 * cpad] + xp[3 * cpad:4 * cpad])

    # DownBlock: 1x1-conv shortcut + relu/3x3/relu/3x3 residual branch.
    x_left = jnp.dot(wl_ref[...], xh, preferred_element_type=f32) + b_ref[0]
    r1 = interior * jnp.maximum(conv3(w1_ref, jnp.maximum(xh, 0.0)) + b_ref[1], 0.0)
    r2 = conv3(w2_ref, r1) + b_ref[2]
    x_half = x_left + r2

    # ULink trunk: relu -> 3x3 conv -> relu -> 4x4 stride-2 transposed conv.
    x1 = interior * jnp.maximum(x_half, 0.0)
    x2 = interior * jnp.maximum(conv3(wc_ref, x1) + b_ref[3], 0.0)
    x3 = conv3(wt_ref, x2)                        # (4*half, lanes): 2x2 out phases
    out_ref[0] = x3.astype(out_ref.dtype)


def ulink_forward(x, wl, bl, w1, b1, w2, b2, wc, bc, wt):
    n, in_c, h, w = x.shape
    assert h % 2 == 0 and w % 2 == 0
    out_c = wl.shape[0]
    half = out_c // 2
    hh, wh = h // 2, w // 2
    hpad, wpad = hh + 2, wh + 2
    pt = ((hpad * wpad + 127) // 128) * 128       # per-image lane stride (x128)
    cpad = ((in_c + 7) // 8) * 8                  # 8-sublane aligned input channels
    f32 = jnp.float32
    x = x.astype(f32)

    # Batch folding: put `bf` images side by side on the lane axis so each matmul
    # sees >= 512 lanes and per-grid-step overhead is amortized.
    # TODO(synk): on v7x keep >= 2 grid steps (2 TensorCores) once n is large
    #             enough to do both; tiny n folds into a single step here.
    bf = max(d for d in range(1, n + 1) if n % d == 0 and d * pt <= max(512, pt))
    ng = n // bf
    lanes = bf * pt

    # ---- layout plumbing: split x into its four 2x2 phases, zero-pad the
    #      half-res grid by 1 pixel, pad channels to a vreg-aligned count,
    #      flatten spatial into the lane axis, fold bf images per lane row. ----
    xs = x.reshape(n, in_c, hh, 2, wh, 2)
    xs = jnp.transpose(xs, (0, 3, 5, 1, 2, 4))                    # (n,py,px,c,i,j)
    xs = jnp.pad(xs, ((0, 0), (0, 0), (0, 0), (0, cpad - in_c), (1, 1), (1, 1)))
    xp = xs.reshape(n, 4 * cpad, hpad * wpad)
    xp = jnp.pad(xp, ((0, 0), (0, 0), (0, pt - hpad * wpad)))
    xp = xp.reshape(ng, bf, 4 * cpad, pt).transpose(0, 2, 1, 3)
    xp = xp.reshape(ng, 4 * cpad, lanes)

    # Interior-pixel mask in the same folded layout (built host-side once).
    mask_np = np.zeros((hpad, wpad), np.float32)
    mask_np[1:1 + hh, 1:1 + wh] = 1.0
    mask_np = np.pad(mask_np.reshape(-1), (0, pt - hpad * wpad))
    mask = jnp.asarray(np.tile(mask_np, bf)).reshape(1, lanes)

    # ---- weight reorg: per-dh (kernel-row) fused contraction matrices so the
    #      kernel runs 3 matmuls on a (3C, lanes) dw-stack + 2 output rolls. ----
    def fuse3x3(wk, c_to):                        # (O, C, 3, 3) -> (3, O, 3*c_to)
        o, c = wk.shape[0], wk.shape[1]
        wk = wk.astype(f32)
        if c_to != c:
            wk = jnp.pad(wk, ((0, 0), (0, c_to - c), (0, 0), (0, 0)))
        return jnp.transpose(wk, (2, 0, 3, 1)).reshape(3, o, 3 * c_to)

    def fuse_deconv(wk):                          # (C, O, 4, 4) -> (3, 4*O, 3*C)
        c, o = wk.shape[0], wk.shape[1]
        blocks = []
        for dh in (-1, 0, 1):
            rows = []
            for py in (0, 1):
                for px in (0, 1):
                    ky = py + 1 - 2 * dh
                    cols = []
                    for dw in (-1, 0, 1):
                        kx = px + 1 - 2 * dw
                        if 0 <= ky < 4 and 0 <= kx < 4:
                            cols.append(jnp.transpose(wk[:, :, ky, kx]))
                        else:
                            cols.append(jnp.zeros((o, c), f32))
                    rows.append(jnp.concatenate(cols, axis=1))    # (o, 3c)
            blocks.append(jnp.concatenate(rows, axis=0))          # (4o, 3c)
        return jnp.stack(blocks, axis=0).astype(f32)

    wl2 = jnp.pad(wl[:, :, 0, 0].astype(f32), ((0, 0), (0, cpad - in_c)))
    w1f = fuse3x3(w1, cpad)
    w2f = fuse3x3(w2, out_c)
    wcf = fuse3x3(wc, out_c)
    wtf = fuse_deconv(wt)
    biases = jnp.stack([v.astype(f32).reshape(out_c, 1) for v in (bl, b1, b2, bc)])

    kernel = functools.partial(_ulink_kernel, cpad=cpad, wpad=wpad, lanes=lanes)
    phases = pl.pallas_call(
        kernel,
        out_shape=jax.ShapeDtypeStruct((ng, 4 * half, lanes), f32),
        grid_spec=pltpu.PrefetchScalarGridSpec(
            num_scalar_prefetch=0,
            grid=(ng,),
            in_specs=[
                pl.BlockSpec((1, 4 * cpad, lanes), lambda b: (b, 0, 0)),
                pl.BlockSpec((1, lanes), lambda b: (0, 0)),
                pl.BlockSpec((out_c, cpad), lambda b: (0, 0)),
                pl.BlockSpec((3, out_c, 3 * cpad), lambda b: (0, 0, 0)),
                pl.BlockSpec((3, out_c, 3 * out_c), lambda b: (0, 0, 0)),
                pl.BlockSpec((3, out_c, 3 * out_c), lambda b: (0, 0, 0)),
                pl.BlockSpec((3, 4 * half, 3 * out_c), lambda b: (0, 0, 0)),
                pl.BlockSpec((4, out_c, 1), lambda b: (0, 0, 0)),
            ],
            out_specs=pl.BlockSpec((1, 4 * half, lanes), lambda b: (b, 0, 0)),
        ),
        compiler_params=pltpu.CompilerParams(dimension_semantics=("parallel",)),
    )(xp, mask, wl2, w1f, w2f, wcf, wtf, biases)

    # ---- layout plumbing: unfold batch, pick the interior, interleave the 2x2
    #      output phases back to full resolution, concat with x. ----
    ph = phases.reshape(ng, 4 * half, bf, pt).transpose(0, 2, 1, 3)
    ph = ph.reshape(n, 4 * half, pt)[:, :, :hpad * wpad]
    ph = ph.reshape(n, 2, 2, half, hpad, wpad)[:, :, :, :, 1:1 + hh, 1:1 + wh]
    x3 = jnp.transpose(ph, (0, 3, 4, 1, 5, 2)).reshape(n, half, h, w)
    return jnp.concatenate([x, x3], axis=1)


# ----------------------------- numpy reference -----------------------------
def _conv3x3_ref(x, w, b):
    n, c, h, ww = x.shape
    o = w.shape[0]
    xp = np.pad(x, ((0, 0), (0, 0), (1, 1), (1, 1)))
    out = np.zeros((n, o, h, ww), np.float32)
    for kh in range(3):
        for kw in range(3):
            out += np.einsum('nchw,oc->nohw',
                             xp[:, :, kh:kh + h, kw:kw + ww], w[:, :, kh, kw])
    return out + b[None, :, None, None]


def _deconv4x4s2p1_ref(x, w):
    n, c, hh, wh = x.shape
    o = w.shape[1]
    out = np.zeros((n, o, 2 * hh, 2 * wh), np.float32)
    for iy in range(hh):
        for ix in range(wh):
            v = x[:, :, iy, ix]
            for ky in range(4):
                oy = 2 * iy - 1 + ky
                if not 0 <= oy < 2 * hh:
                    continue
                for kx in range(4):
                    ox = 2 * ix - 1 + kx
                    if not 0 <= ox < 2 * wh:
                        continue
                    out[:, :, oy, ox] += v @ w[:, :, ky, kx]
    return out


def ulink_reference(x, wl, bl, w1, b1, w2, b2, wc, bc, wt):
    x, wl, bl, w1, b1, w2, b2, wc, bc, wt = (
        np.asarray(a, np.float32) for a in (x, wl, bl, w1, b1, w2, b2, wc, bc, wt))
    n, c, h, w = x.shape
    xh = x.reshape(n, c, h // 2, 2, w // 2, 2).mean(axis=(3, 5))
    x_left = np.einsum('nchw,oc->nohw', xh, wl[:, :, 0, 0]) + bl[None, :, None, None]
    xr = np.maximum(xh, 0.0)
    xr = np.maximum(_conv3x3_ref(xr, w1, b1), 0.0)
    xr = _conv3x3_ref(xr, w2, b2)
    x_half = x_left + xr
    x1 = np.maximum(x_half, 0.0)
    x2 = np.maximum(_conv3x3_ref(x1, wc, bc), 0.0)
    x3 = _deconv4x4s2p1_ref(x2, wt)
    return np.concatenate([x, x3], axis=1)


if __name__ == "__main__":
    key = jax.random.PRNGKey(0)
    ks = jax.random.split(key, 10)
    N, IN_C, OUT_C, H, W = 2, 4, 8, 16, 16
    HALF = OUT_C // 2

    x = jax.random.normal(ks[0], (N, IN_C, H, W), jnp.float32)
    # DownBlock: conv_left (1x1), conv_1 (3x3), conv_2 (3x3)
    wl = jax.random.uniform(ks[1], (OUT_C, IN_C, 1, 1), jnp.float32, -0.5, 0.5)
    bl = jax.random.uniform(ks[2], (OUT_C,), jnp.float32, -0.1, 0.1)
    w1 = jax.random.uniform(ks[3], (OUT_C, IN_C, 3, 3), jnp.float32, -0.3, 0.3)
    b1 = jax.random.uniform(ks[4], (OUT_C,), jnp.float32, -0.1, 0.1)
    w2 = jax.random.uniform(ks[5], (OUT_C, OUT_C, 3, 3), jnp.float32, -0.2, 0.2)
    b2 = jax.random.uniform(ks[6], (OUT_C,), jnp.float32, -0.1, 0.1)
    # ULink: self.conv (3x3), self.up (ConvTranspose2d, bias=False)
    wc = jax.random.uniform(ks[7], (OUT_C, OUT_C, 3, 3), jnp.float32, -0.2, 0.2)
    bc = jax.random.uniform(ks[8], (OUT_C,), jnp.float32, -0.1, 0.1)
    wt = jax.random.uniform(ks[9], (OUT_C, HALF, 4, 4), jnp.float32, -0.25, 0.25)

    out = jax.jit(ulink_forward)(x, wl, bl, w1, b1, w2, b2, wc, bc, wt)
    out = jax.block_until_ready(out)

    ref = ulink_reference(x, wl, bl, w1, b1, w2, b2, wc, bc, wt)
    assert out.shape == (N, IN_C + HALF, H, W)
    np.testing.assert_allclose(np.asarray(out), ref, rtol=1e-3, atol=1e-3)
    print("KERNEL_OK")
</pallas_src>

<mosaic_0001>
module attributes {stable_mosaic.version = 11 : i64} {
  func.func @_ulink_kernel(%arg0: i32, %arg1: memref<1x32x256xf32, #tpu.memory_space<vmem>>, %arg2: memref<1x256xf32, #tpu.memory_space<vmem>>, %arg3: memref<8x8xf32, #tpu.memory_space<vmem>>, %arg4: memref<3x8x24xf32, #tpu.memory_space<vmem>>, %arg5: memref<3x8x24xf32, #tpu.memory_space<vmem>>, %arg6: memref<3x8x24xf32, #tpu.memory_space<vmem>>, %arg7: memref<3x16x24xf32, #tpu.memory_space<vmem>>, %arg8: memref<4x8x1xf32, #tpu.memory_space<vmem>>, %arg9: memref<1x16x256xf32, #tpu.memory_space<vmem>>) attributes {dimension_semantics = [#tpu.dimension_semantics<parallel>], iteration_bounds = array<i64: 1>, scalar_prefetch = 0 : i64, scratch_operands = 0 : i64, tpu.core_type = #tpu.core_type<tc>, window_params = [{transform_indices = @transform_0, window_bounds = array<i64: 1, 32, 256>}, {pipeline_mode = #tpu.pipeline_mode<synchronous>, transform_indices = @transform_1, window_bounds = array<i64: 1, 256>}, {pipeline_mode = #tpu.pipeline_mode<synchronous>, transform_indices = @transform_2, window_bounds = array<i64: 8, 8>}, {pipeline_mode = #tpu.pipeline_mode<synchronous>, transform_indices = @transform_3, window_bounds = array<i64: 3, 8, 24>}, {pipeline_mode = #tpu.pipeline_mode<synchronous>, transform_indices = @transform_4, window_bounds = array<i64: 3, 8, 24>}, {pipeline_mode = #tpu.pipeline_mode<synchronous>, transform_indices = @transform_5, window_bounds = array<i64: 3, 8, 24>}, {pipeline_mode = #tpu.pipeline_mode<synchronous>, transform_indices = @transform_6, window_bounds = array<i64: 3, 16, 24>}, {pipeline_mode = #tpu.pipeline_mode<synchronous>, transform_indices = @transform_7, window_bounds = array<i64: 4, 8, 1>}, {transform_indices = @transform_8, window_bounds = array<i64: 1, 16, 256>}]} {
    %c0 = arith.constant 0 : index
    %c0_0 = arith.constant 0 : index
    %0 = vector.load %arg2[%c0, %c0_0] : memref<1x256xf32, #tpu.memory_space<vmem>>, vector<1x256xf32>
    %c0_1 = arith.constant 0 : index
    %c0_2 = arith.constant 0 : index
    %c0_3 = arith.constant 0 : index
    %1 = vector.load %arg1[%c0_1, %c0_2, %c0_3] : memref<1x32x256xf32, #tpu.memory_space<vmem>>, vector<1x32x256xf32>
    %2 = vector.shape_cast %1 : vector<1x32x256xf32> to vector<32x256xf32>
    %3 = vector.extract_strided_slice %2 {offsets = [0, 0], sizes = [8, 256], strides = [1, 1]} : vector<32x256xf32> to vector<8x256xf32>
    %4 = vector.extract_strided_slice %2 {offsets = [8, 0], sizes = [8, 256], strides = [1, 1]} : vector<32x256xf32> to vector<8x256xf32>
    %5 = arith.addf %3, %4 : vector<8x256xf32>
    %6 = vector.extract_strided_slice %2 {offsets = [16, 0], sizes = [8, 256], strides = [1, 1]} : vector<32x256xf32> to vector<8x256xf32>
    %7 = arith.addf %5, %6 : vector<8x256xf32>
    %8 = vector.extract_strided_slice %2 {offsets = [24, 0], sizes = [8, 256], strides = [1, 1]} : vector<32x256xf32> to vector<8x256xf32>
    %9 = arith.addf %7, %8 : vector<8x256xf32>
    %cst = arith.constant 2.500000e-01 : f32
    %10 = vector.broadcast %cst : f32 to vector<8x256xf32>
    %11 = arith.mulf %10, %9 : vector<8x256xf32>
    %c0_4 = arith.constant 0 : index
    %c0_5 = arith.constant 0 : index
    %12 = vector.load %arg3[%c0_4, %c0_5] : memref<8x8xf32, #tpu.memory_space<vmem>>, vector<8x8xf32>
    %cst_6 = arith.constant dense<0.000000e+00> : vector<8x256xf32>
    %13 = tpu.matmul %12, %11, %cst_6 {dimension_numbers = #tpu.dot_dimension_numbers<[1], [0], [0], [1], [0, 0, 1, 1], [], []>} : vector<8x8xf32>, vector<8x256xf32>, vector<8x256xf32> -> vector<8x256xf32>
    %c0_7 = arith.constant 0 : index
    %c0_8 = arith.constant 0 : index
    %c0_9 = arith.constant 0 : index
    %14 = vector.load %arg8[%c0_7, %c0_8, %c0_9] : memref<4x8x1xf32, #tpu.memory_space<vmem>>, vector<1x8x1xf32>
    %15 = vector.shape_cast %14 : vector<1x8x1xf32> to vector<8x1xf32>
    %16 = vector.broadcast %15 : vector<8x1xf32> to vector<8x256xf32>
    %17 = arith.addf %13, %16 : vector<8x256xf32>
    %cst_10 = arith.constant 0.000000e+00 : f32
    %18 = vector.broadcast %cst_10 : f32 to vector<8x256xf32>
    %19 = arith.maximumf %11, %18 : vector<8x256xf32>
    %c1_i32 = arith.constant 1 : i32
    %20 = tpu.dynamic_rotate %19 by %c1_i32 dim 1 : vector<8x256xf32>, i32 -> vector<8x256xf32>
    %c255_i32 = arith.constant 255 : i32
    %21 = tpu.dynamic_rotate %19 by %c255_i32 dim 1 : vector<8x256xf32>, i32 -> vector<8x256xf32>
    %22 = tpu.concatenate %20, %19, %21 in 0 : vector<8x256xf32>, vector<8x256xf32>, vector<8x256xf32> -> vector<24x256xf32>
    %c0_11 = arith.constant 0 : index
    %c0_12 = arith.constant 0 : index
    %c0_13 = arith.constant 0 : index
    %23 = vector.load %arg4[%c0_11, %c0_12, %c0_13] : memref<3x8x24xf32, #tpu.memory_space<vmem>>, vector<1x8x24xf32>
    %24 = vector.shape_cast %23 : vector<1x8x24xf32> to vector<8x24xf32>
    %cst_14 = arith.constant dense<0.000000e+00> : vector<8x256xf32>
    %25 = tpu.matmul %24, %22, %cst_14 {dimension_numbers = #tpu.dot_dimension_numbers<[1], [0], [0], [1], [0, 0, 1, 1], [], []>} : vector<8x24xf32>, vector<24x256xf32>, vector<8x256xf32> -> vector<8x256xf32>
    %c1 = arith.constant 1 : index
    %c0_15 = arith.constant 0 : index
    %c0_16 = arith.constant 0 : index
    %26 = vector.load %arg4[%c1, %c0_15, %c0_16] : memref<3x8x24xf32, #tpu.memory_space<vmem>>, vector<1x8x24xf32>
    %27 = vector.shape_cast %26 : vector<1x8x24xf32> to vector<8x24xf32>
    %cst_17 = arith.constant dense<0.000000e+00> : vector<8x256xf32>
    %28 = tpu.matmul %27, %22, %cst_17 {dimension_numbers = #tpu.dot_dimension_numbers<[1], [0], [0], [1], [0, 0, 1, 1], [], []>} : vector<8x24xf32>, vector<24x256xf32>, vector<8x256xf32> -> vector<8x256xf32>
    %c2 = arith.constant 2 : index
    %c0_18 = arith.constant 0 : index
    %c0_19 = arith.constant 0 : index
    %29 = vector.load %arg4[%c2, %c0_18, %c0_19] : memref<3x8x24xf32, #tpu.memory_space<vmem>>, vector<1x8x24xf32>
    %30 = vector.shape_cast %29 : vector<1x8x24xf32> to vector<8x24xf32>
    %cst_20 = arith.constant dense<0.000000e+00> : vector<8x256xf32>
    %31 = tpu.matmul %30, %22, %cst_20 {dimension_numbers = #tpu.dot_dimension_numbers<[1], [0], [0], [1], [0, 0, 1, 1], [], []>} : vector<8x24xf32>, vector<24x256xf32>, vector<8x256xf32> -> vector<8x256xf32>
    %c10_i32 = arith.constant 10 : i32
    %32 = tpu.dynamic_rotate %25 by %c10_i32 dim 1 : vector<8x256xf32>, i32 -> vector<8x256xf32>
    %33 = arith.addf %28, %32 : vector<8x256xf32>
    %c246_i32 = arith.constant 246 : i32
    %34 = tpu.dynamic_rotate %31 by %c246_i32 dim 1 : vector<8x256xf32>, i32 -> vector<8x256xf32>
    %35 = arith.addf %33, %34 : vector<8x256xf32>
    %c1_21 = arith.constant 1 : index
    %c0_22 = arith.constant 0 : index
    %c0_23 = arith.constant 0 : index
    %36 = vector.load %arg8[%c1_21, %c0_22, %c0_23] : memref<4x8x1xf32, #tpu.memory_space<vmem>>, vector<1x8x1xf32>
    %37 = vector.shape_cast %36 : vector<1x8x1xf32> to vector<8x1xf32>
    %38 = vector.broadcast %37 : vector<8x1xf32> to vector<8x256xf32>
    %39 = arith.addf %35, %38 : vector<8x256xf32>
    %cst_24 = arith.constant 0.000000e+00 : f32
    %40 = vector.broadcast %cst_24 : f32 to vector<8x256xf32>
    %41 = arith.maximumf %39, %40 : vector<8x256xf32>
    %42 = vector.broadcast %0 : vector<1x256xf32> to vector<8x256xf32>
    %43 = arith.mulf %42, %41 : vector<8x256xf32>
    %c1_i32_25 = arith.constant 1 : i32
    %44 = tpu.dynamic_rotate %43 by %c1_i32_25 dim 1 : vector<8x256xf32>, i32 -> vector<8x256xf32>
    %c255_i32_26 = arith.constant 255 : i32
    %45 = tpu.dynamic_rotate %43 by %c255_i32_26 dim 1 : vector<8x256xf32>, i32 -> vector<8x256xf32>
    %46 = tpu.concatenate %44, %43, %45 in 0 : vector<8x256xf32>, vector<8x256xf32>, vector<8x256xf32> -> vector<24x256xf32>
    %c0_27 = arith.constant 0 : index
    %c0_28 = arith.constant 0 : index
    %c0_29 = arith.constant 0 : index
    %47 = vector.load %arg5[%c0_27, %c0_28, %c0_29] : memref<3x8x24xf32, #tpu.memory_space<vmem>>, vector<1x8x24xf32>
    %48 = vector.shape_cast %47 : vector<1x8x24xf32> to vector<8x24xf32>
    %cst_30 = arith.constant dense<0.000000e+00> : vector<8x256xf32>
    %49 = tpu.matmul %48, %46, %cst_30 {dimension_numbers = #tpu.dot_dimension_numbers<[1], [0], [0], [1], [0, 0, 1, 1], [], []>} : vector<8x24xf32>, vector<24x256xf32>, vector<8x256xf32> -> vector<8x256xf32>
    %c1_31 = arith.constant 1 : index
    %c0_32 = arith.constant 0 : index
    %c0_33 = arith.constant 0 : index
    %50 = vector.load %arg5[%c1_31, %c0_32, %c0_33] : memref<3x8x24xf32, #tpu.memory_space<vmem>>, vector<1x8x24xf32>
    %51 = vector.shape_cast %50 : vector<1x8x24xf32> to vector<8x24xf32>
    %cst_34 = arith.constant dense<0.000000e+00> : vector<8x256xf32>
    %52 = tpu.matmul %51, %46, %cst_34 {dimension_numbers = #tpu.dot_dimension_numbers<[1], [0], [0], [1], [0, 0, 1, 1], [], []>} : vector<8x24xf32>, vector<24x256xf32>, vector<8x256xf32> -> vector<8x256xf32>
    %c2_35 = arith.constant 2 : index
    %c0_36 = arith.constant 0 : index
    %c0_37 = arith.constant 0 : index
    %53 = vector.load %arg5[%c2_35, %c0_36, %c0_37] : memref<3x8x24xf32, #tpu.memory_space<vmem>>, vector<1x8x24xf32>
    %54 = vector.shape_cast %53 : vector<1x8x24xf32> to vector<8x24xf32>
    %cst_38 = arith.constant dense<0.000000e+00> : vector<8x256xf32>
    %55 = tpu.matmul %54, %46, %cst_38 {dimension_numbers = #tpu.dot_dimension_numbers<[1], [0], [0], [1], [0, 0, 1, 1], [], []>} : vector<8x24xf32>, vector<24x256xf32>, vector<8x256xf32> -> vector<8x256xf32>
    %c10_i32_39 = arith.constant 10 : i32
    %56 = tpu.dynamic_rotate %49 by %c10_i32_39 dim 1 : vector<8x256xf32>, i32 -> vector<8x256xf32>
    %57 = arith.addf %52, %56 : vector<8x256xf32>
    %c246_i32_40 = arith.constant 246 : i32
    %58 = tpu.dynamic_rotate %55 by %c246_i32_40 dim 1 : vector<8x256xf32>, i32 -> vector<8x256xf32>
    %59 = arith.addf %57, %58 : vector<8x256xf32>
    %c2_41 = arith.constant 2 : index
    %c0_42 = arith.constant 0 : index
    %c0_43 = arith.constant 0 : index
    %60 = vector.load %arg8[%c2_41, %c0_42, %c0_43] : memref<4x8x1xf32, #tpu.memory_space<vmem>>, vector<1x8x1xf32>
    %61 = vector.shape_cast %60 : vector<1x8x1xf32> to vector<8x1xf32>
    %62 = vector.broadcast %61 : vector<8x1xf32> to vector<8x256xf32>
    %63 = arith.addf %59, %62 : vector<8x256xf32>
    %64 = arith.addf %17, %63 : vector<8x256xf32>
    %cst_44 = arith.constant 0.000000e+00 : f32
    %65 = vector.broadcast %cst_44 : f32 to vector<8x256xf32>
    %66 = arith.maximumf %64, %65 : vector<8x256xf32>
    %67 = vector.broadcast %0 : vector<1x256xf32> to vector<8x256xf32>
    %68 = arith.mulf %67, %66 : vector<8x256xf32>
    %c1_i32_45 = arith.constant 1 : i32
    %69 = tpu.dynamic_rotate %68 by %c1_i32_45 dim 1 : vector<8x256xf32>, i32 -> vector<8x256xf32>
    %c255_i32_46 = arith.constant 255 : i32
    %70 = tpu.dynamic_rotate %68 by %c255_i32_46 dim 1 : vector<8x256xf32>, i32 -> vector<8x256xf32>
    %71 = tpu.concatenate %69, %68, %70 in 0 : vector<8x256xf32>, vector<8x256xf32>, vector<8x256xf32> -> vector<24x256xf32>
    %c0_47 = arith.constant 0 : index
    %c0_48 = arith.constant 0 : index
    %c0_49 = arith.constant 0 : index
    %72 = vector.load %arg6[%c0_47, %c0_48, %c0_49] : memref<3x8x24xf32, #tpu.memory_space<vmem>>, vector<1x8x24xf32>
    %73 = vector.shape_cast %72 : vector<1x8x24xf32> to vector<8x24xf32>
    %cst_50 = arith.constant dense<0.000000e+00> : vector<8x256xf32>
    %74 = tpu.matmul %73, %71, %cst_50 {dimension_numbers = #tpu.dot_dimension_numbers<[1], [0], [0], [1], [0, 0, 1, 1], [], []>} : vector<8x24xf32>, vector<24x256xf32>, vector<8x256xf32> -> vector<8x256xf32>
    %c1_51 = arith.constant 1 : index
    %c0_52 = arith.constant 0 : index
    %c0_53 = arith.constant 0 : index
    %75 = vector.load %arg6[%c1_51, %c0_52, %c0_53] : memref<3x8x24xf32, #tpu.memory_space<vmem>>, vector<1x8x24xf32>
    %76 = vector.shape_cast %75 : vector<1x8x24xf32> to vector<8x24xf32>
    %cst_54 = arith.constant dense<0.000000e+00> : vector<8x256xf32>
    %77 = tpu.matmul %76, %71, %cst_54 {dimension_numbers = #tpu.dot_dimension_numbers<[1], [0], [0], [1], [0, 0, 1, 1], [], []>} : vector<8x24xf32>, vector<24x256xf32>, vector<8x256xf32> -> vector<8x256xf32>
    %c2_55 = arith.constant 2 : index
    %c0_56 = arith.constant 0 : index
    %c0_57 = arith.constant 0 : index
    %78 = vector.load %arg6[%c2_55, %c0_56, %c0_57] : memref<3x8x24xf32, #tpu.memory_space<vmem>>, vector<1x8x24xf32>
    %79 = vector.shape_cast %78 : vector<1x8x24xf32> to vector<8x24xf32>
    %cst_58 = arith.constant dense<0.000000e+00> : vector<8x256xf32>
    %80 = tpu.matmul %79, %71, %cst_58 {dimension_numbers = #tpu.dot_dimension_numbers<[1], [0], [0], [1], [0, 0, 1, 1], [], []>} : vector<8x24xf32>, vector<24x256xf32>, vector<8x256xf32> -> vector<8x256xf32>
    %c10_i32_59 = arith.constant 10 : i32
    %81 = tpu.dynamic_rotate %74 by %c10_i32_59 dim 1 : vector<8x256xf32>, i32 -> vector<8x256xf32>
    %82 = arith.addf %77, %81 : vector<8x256xf32>
    %c246_i32_60 = arith.constant 246 : i32
    %83 = tpu.dynamic_rotate %80 by %c246_i32_60 dim 1 : vector<8x256xf32>, i32 -> vector<8x256xf32>
    %84 = arith.addf %82, %83 : vector<8x256xf32>
    %c3 = arith.constant 3 : index
    %c0_61 = arith.constant 0 : index
    %c0_62 = arith.constant 0 : index
    %85 = vector.load %arg8[%c3, %c0_61, %c0_62] : memref<4x8x1xf32, #tpu.memory_space<vmem>>, vector<1x8x1xf32>
    %86 = vector.shape_cast %85 : vector<1x8x1xf32> to vector<8x1xf32>
    %87 = vector.broadcast %86 : vector<8x1xf32> to vector<8x256xf32>
    %88 = arith.addf %84, %87 : vector<8x256xf32>
    %cst_63 = arith.constant 0.000000e+00 : f32
    %89 = vector.broadcast %cst_63 : f32 to vector<8x256xf32>
    %90 = arith.maximumf %88, %89 : vector<8x256xf32>
    %91 = vector.broadcast %0 : vector<1x256xf32> to vector<8x256xf32>
    %92 = arith.mulf %91, %90 : vector<8x256xf32>
    %c1_i32_64 = arith.constant 1 : i32
    %93 = tpu.dynamic_rotate %92 by %c1_i32_64 dim 1 : vector<8x256xf32>, i32 -> vector<8x256xf32>
    %c255_i32_65 = arith.constant 255 : i32
    %94 = tpu.dynamic_rotate %92 by %c255_i32_65 dim 1 : vector<8x256xf32>, i32 -> vector<8x256xf32>
    %95 = tpu.concatenate %93, %92, %94 in 0 : vector<8x256xf32>, vector<8x256xf32>, vector<8x256xf32> -> vector<24x256xf32>
    %c0_66 = arith.constant 0 : index
    %c0_67 = arith.constant 0 : index
    %c0_68 = arith.constant 0 : index
    %96 = vector.load %arg7[%c0_66, %c0_67, %c0_68] : memref<3x16x24xf32, #tpu.memory_space<vmem>>, vector<1x16x24xf32>
    %97 = vector.shape_cast %96 : vector<1x16x24xf32> to vector<16x24xf32>
    %cst_69 = arith.constant dense<0.000000e+00> : vector<16x256xf32>
    %98 = tpu.matmul %97, %95, %cst_69 {dimension_numbers = #tpu.dot_dimension_numbers<[1], [0], [0], [1], [0, 0, 1, 1], [], []>} : vector<16x24xf32>, vector<24x256xf32>, vector<16x256xf32> -> vector<16x256xf32>
    %c1_70 = arith.constant 1 : index
    %c0_71 = arith.constant 0 : index
    %c0_72 = arith.constant 0 : index
    %99 = vector.load %arg7[%c1_70, %c0_71, %c0_72] : memref<3x16x24xf32, #tpu.memory_space<vmem>>, vector<1x16x24xf32>
    %100 = vector.shape_cast %99 : vector<1x16x24xf32> to vector<16x24xf32>
    %cst_73 = arith.constant dense<0.000000e+00> : vector<16x256xf32>
    %101 = tpu.matmul %100, %95, %cst_73 {dimension_numbers = #tpu.dot_dimension_numbers<[1], [0], [0], [1], [0, 0, 1, 1], [], []>} : vector<16x24xf32>, vector<24x256xf32>, vector<16x256xf32> -> vector<16x256xf32>
    %c2_74 = arith.constant 2 : index
    %c0_75 = arith.constant 0 : index
    %c0_76 = arith.constant 0 : index
    %102 = vector.load %arg7[%c2_74, %c0_75, %c0_76] : memref<3x16x24xf32, #tpu.memory_space<vmem>>, vector<1x16x24xf32>
    %103 = vector.shape_cast %102 : vector<1x16x24xf32> to vector<16x24xf32>
    %cst_77 = arith.constant dense<0.000000e+00> : vector<16x256xf32>
    %104 = tpu.matmul %103, %95, %cst_77 {dimension_numbers = #tpu.dot_dimension_numbers<[1], [0], [0], [1], [0, 0, 1, 1], [], []>} : vector<16x24xf32>, vector<24x256xf32>, vector<16x256xf32> -> vector<16x256xf32>
    %c10_i32_78 = arith.constant 10 : i32
    %105 = tpu.dynamic_rotate %98 by %c10_i32_78 dim 1 : vector<16x256xf32>, i32 -> vector<16x256xf32>
    %106 = arith.addf %101, %105 : vector<16x256xf32>
    %c246_i32_79 = arith.constant 246 : i32
    %107 = tpu.dynamic_rotate %104 by %c246_i32_79 dim 1 : vector<16x256xf32>, i32 -> vector<16x256xf32>
    %108 = arith.addf %106, %107 : vector<16x256xf32>
    %c0_80 = arith.constant 0 : index
    %c0_81 = arith.constant 0 : index
    %c0_82 = arith.constant 0 : index
    %109 = vector.load %arg9[%c0_80, %c0_81, %c0_82] : memref<1x16x256xf32, #tpu.memory_space<vmem>>, vector<1x16x256xf32>
    %110 = vector.shape_cast %109 : vector<1x16x256xf32> to vector<16x256xf32>
    %111 = vector.shape_cast %108 : vector<16x256xf32> to vector<1x16x256xf32>
    tpu.vector_store %arg9[%c0_80, %c0_81, %c0_82], %111 {strides = array<i32>} : memref<1x16x256xf32, #tpu.memory_space<vmem>>, vector<1x16x256xf32>,
    return
  }
  func.func @transform_0(%arg0: i32) -> (i32, i32, i32) {
    %c0_i32 = arith.constant 0 : i32
    %c0_i32_0 = arith.constant 0 : i32
    %c0_i32_1 = arith.constant 0 : i32
    return %arg0, %c0_i32, %c0_i32_0 : i32, i32, i32
  }
  func.func @transform_1(%arg0: i32) -> (i32, i32) {
    %c0_i32 = arith.constant 0 : i32
    %c0_i32_0 = arith.constant 0 : i32
    %c0_i32_1 = arith.constant 0 : i32
    return %c0_i32, %c0_i32_0 : i32, i32
  }
  func.func @transform_2(%arg0: i32) -> (i32, i32) {
    %c0_i32 = arith.constant 0 : i32
    %c0_i32_0 = arith.constant 0 : i32
    %c0_i32_1 = arith.constant 0 : i32
    return %c0_i32, %c0_i32_0 : i32, i32
  }
  func.func @transform_3(%arg0: i32) -> (i32, i32, i32) {
    %c0_i32 = arith.constant 0 : i32
    %c0_i32_0 = arith.constant 0 : i32
    %c0_i32_1 = arith.constant 0 : i32
    %c0_i32_2 = arith.constant 0 : i32
    return %c0_i32, %c0_i32_0, %c0_i32_1 : i32, i32, i32
  }
  func.func @transform_4(%arg0: i32) -> (i32, i32, i32) {
    %c0_i32 = arith.constant 0 : i32
    %c0_i32_0 = arith.constant 0 : i32
    %c0_i32_1 = arith.constant 0 : i32
    %c0_i32_2 = arith.constant 0 : i32
    return %c0_i32, %c0_i32_0, %c0_i32_1 : i32, i32, i32
  }
  func.func @transform_5(%arg0: i32) -> (i32, i32, i32) {
    %c0_i32 = arith.constant 0 : i32
    %c0_i32_0 = arith.constant 0 : i32
    %c0_i32_1 = arith.constant 0 : i32
    %c0_i32_2 = arith.constant 0 : i32
    return %c0_i32, %c0_i32_0, %c0_i32_1 : i32, i32, i32
  }
  func.func @transform_6(%arg0: i32) -> (i32, i32, i32) {
    %c0_i32 = arith.constant 0 : i32
    %c0_i32_0 = arith.constant 0 : i32
    %c0_i32_1 = arith.constant 0 : i32
    %c0_i32_2 = arith.constant 0 : i32
    return %c0_i32, %c0_i32_0, %c0_i32_1 : i32, i32, i32
  }
  func.func @transform_7(%arg0: i32) -> (i32, i32, i32) {
    %c0_i32 = arith.constant 0 : i32
    %c0_i32_0 = arith.constant 0 : i32
    %c0_i32_1 = arith.constant 0 : i32
    %c0_i32_2 = arith.constant 0 : i32
    return %c0_i32, %c0_i32_0, %c0_i32_1 : i32, i32, i32
  }
  func.func @transform_8(%arg0: i32) -> (i32, i32, i32) {
    %c0_i32 = arith.constant 0 : i32
    %c0_i32_0 = arith.constant 0 : i32
    %c0_i32_1 = arith.constant 0 : i32
    return %arg0, %c0_i32, %c0_i32_0 : i32, i32, i32
  }
}

</mosaic_0001>

<llo_original>
// kernel: ulink_forward.1
$region0: #{ulink_forward.1}
  #allocation0 [shape = 'u32[]', space=smem, size = 0x4, offset = 0x4, fixed_abs, tag = 'smem constant byte address 0x4 - core index']
  #allocation1 [shape = 'u32[144,128]{1,0:T(1,128)}', space=vmem, size = 0x12000, scoped, tag = 'internal scratch']
  %s0 = inlined_call_operand.vmem [shape: f32[1,32,256], index: 0, kind: input, shape index: {}]
  %s1 = inlined_call_operand.vmem [shape: f32[1,256], index: 1, kind: input, shape index: {}]
  %s2 = inlined_call_operand.vmem [shape: f32[8,8], index: 2, kind: input, shape index: {}]
  %s3 = inlined_call_operand.vmem [shape: f32[3,8,24], index: 3, kind: input, shape index: {}]
  %s4 = inlined_call_operand.vmem [shape: f32[3,8,24], index: 4, kind: input, shape index: {}]
  %s5 = inlined_call_operand.vmem [shape: f32[3,8,24], index: 5, kind: input, shape index: {}]
  %s6 = inlined_call_operand.vmem [shape: f32[3,16,24], index: 6, kind: input, shape index: {}]
  %s7 = inlined_call_operand.vmem [shape: f32[4,8,1], index: 7, kind: input, shape index: {}]
  %s8 = inlined_call_operand.vmem [shape: f32[1,16,256], index: 8, kind: output, shape index: {}]
  %s9 = sld [smem:[#allocation0]]
  $region42: #{ulink_forward.1} parent=0
    _
  %s11 = ssub.s32 1, %s9
  %s12 = scalar_select 0, %s11, %s9
  // Predicated region
  $region2: #{ulink_forward.1} parent=0 // pred_check
    _
  $region3: #{ulink_forward.1} parent=0 // pred_check_branch
    %14 = sbr.rel (0) target = $region5
  $region4: #{ulink_forward.1} parent=0 // pred_region
    _
  $region5: #{ulink_forward.1} parent=0 // pred_fallthru
    _
  // Predicated region
  $region6: #{ulink_forward.1} parent=0 // pred_check
    _
  $region7: #{ulink_forward.1} parent=0 // pred_check_branch
    %16 = sbr.rel (0) target = $region9
  $region8: #{ulink_forward.1} parent=0 // pred_region
    _
  $region9: #{ulink_forward.1} parent=0 // pred_fallthru
    _
  // Predicated region
  $region10: #{ulink_forward.1} parent=0 // pred_check
    _
  $region11: #{ulink_forward.1} parent=0 // pred_check_branch
    %18 = sbr.rel (0) target = $region13
  $region12: #{ulink_forward.1} parent=0 // pred_region
    _
  $region13: #{ulink_forward.1} parent=0 // pred_fallthru
    _
  // Predicated region
  $region14: #{ulink_forward.1} parent=0 // pred_check
    _
  $region15: #{ulink_forward.1} parent=0 // pred_check_branch
    %20 = sbr.rel (0) target = $region17
  $region16: #{ulink_forward.1} parent=0 // pred_region
    _
  $region17: #{ulink_forward.1} parent=0 // pred_fallthru
    _
  // Predicated region
  $region18: #{ulink_forward.1} parent=0 // pred_check
    _
  $region19: #{ulink_forward.1} parent=0 // pred_check_branch
    %22 = sbr.rel (0) target = $region21
  $region20: #{ulink_forward.1} parent=0 // pred_region
    _
  $region21: #{ulink_forward.1} parent=0 // pred_fallthru
    _
  // Predicated region
  $region22: #{ulink_forward.1} parent=0 // pred_check
    _
  $region23: #{ulink_forward.1} parent=0 // pred_check_branch
    %24 = sbr.rel (0) target = $region25
  $region24: #{ulink_forward.1} parent=0 // pred_region
    _
  $region25: #{ulink_forward.1} parent=0 // pred_fallthru
    _
  // Predicated region
  $region26: #{ulink_forward.1} parent=0 // pred_check
    _
  $region27: #{ulink_forward.1} parent=0 // pred_check_branch
    %26 = sbr.rel (0) target = $region29
  $region28: #{ulink_forward.1} parent=0 // pred_region
    _
  $region29: #{ulink_forward.1} parent=0 // pred_fallthru
    _
  // Predicated region
  $region30: #{ulink_forward.1} parent=0 // pred_check
    _
  $region31: #{ulink_forward.1} parent=0 // pred_check_branch
    %28 = sbr.rel (0) target = $region33
  $region32: #{ulink_forward.1} parent=0 // pred_region
    _
  $region33: #{ulink_forward.1} parent=0 // pred_fallthru
    _
  %v29 = vld [vmem:[%s1] sm:$0x3]
  %v30 = vld [vmem:[%s0] sm:$0xff]
  %v31 = vld [vmem:[%s0 + $0x8] sm:$0xff]
  %v32 = vld [vmem:[%s0 + $0x10] sm:$0xff]
  %v33 = vld [vmem:[%s0 + $0x18] sm:$0xff]
  %v34 = vld [vmem:[%s0 + $0x20] sm:$0xff]
  %v35 = vld [vmem:[%s0 + $0x28] sm:$0xff]
  %v36 = vld [vmem:[%s0 + $0x30] sm:$0xff]
  %v37 = vld [vmem:[%s0 + $0x38] sm:$0xff]
  %v38 = vadd.f32 %v30, %v32
  %v39 = vadd.f32 %v31, %v33
  %v40 = vadd.f32 %v38, %v34
  %v41 = vadd.f32 %v39, %v35
  %v42 = vadd.f32 %v40, %v36
  %v43 = vadd.f32 %v41, %v37
  %v44 = vmul.f32 %v42, 0.25
  %v45 = vmul.f32 %v43, 0.25
  %v46 = vld [vmem:[%s2] sm:$0xff]
  %v47 = vld [vmem:[%s7] sm:$0xff]
  %49 = vset.pattern.permute.xlu0 0
  %50 = vperm.xlu0 %49, %v47
  %v51 = vpop.permute.xlu0 %50
  %vm53 = vcmask 64512
  %v55 = vsel %vm53, %v46, 0
  %57 = vmatprep.subr.mxu0 %v45
  %58 = vmatpush1.msra.mxu0 %v44
  %59 = vmatprep.subr.mxu0 0.0
  %60 = vmatpush1.msra.mxu0 0.0
  %61 = vmatprep.subr.mxu0 0.0
  %62 = vmatpush1.msra.mxu0 0.0
  %63 = vmatprep.subr.mxu0 0.0
  %64 = vmatpush1.msra.mxu0 0.0
  %65 = vmatprep.subr.mxu0 0.0
  %66 = vmatpush1.msra.mxu0 0.0
  %67 = vmatprep.subr.mxu0 0.0
  %68 = vmatpush1.msra.mxu0 0.0
  %69 = vmatprep.subr.mxu0 0.0
  %70 = vmatpush1.msra.mxu0 0.0
  %71 = vmatprep.subr.mxu0 0.0
  %72 = vmatpush1.msra.mxu0 0.0
  %73 = vmatprep.subr.mxu0 0.0
  %74 = vmatpush1.msra.mxu0 0.0
  %75 = vmatprep.subr.mxu0 0.0
  %76 = vmatpush1.msra.mxu0 0.0
  %77 = vmatprep.subr.mxu0 0.0
  %78 = vmatpush1.msra.mxu0 0.0
  %79 = vmatprep.subr.mxu0 0.0
  %80 = vmatpush1.msra.mxu0 0.0
  %81 = vmatprep.subr.mxu0 0.0
  %82 = vmatpush1.msra.mxu0 0.0
  %83 = vmatprep.subr.mxu0 0.0
  %84 = vmatpush1.msra.mxu0 0.0
  %85 = vmatprep.subr.mxu0 0.0
  %86 = vmatpush1.msra.mxu0 0.0
  %87 = vmatprep.subr.mxu0 0.0
  %88 = vmatpush1.msra.mxu0 0.0
  %89 = vmatprep.subr.mxu0 0.0
  %90 = vmatpush1.msra.mxu0 0.0
  %91 = vmatprep.subr.mxu0 0.0
  %92 = vmatpush1.msra.mxu0 0.0
  %93 = vmatprep.subr.mxu0 0.0
  %94 = vmatpush1.msra.mxu0 0.0
  %95 = vmatprep.subr.mxu0 0.0
  %96 = vmatpush1.msra.mxu0 0.0
  %97 = vmatprep.subr.mxu0 0.0
  %98 = vmatpush1.msra.mxu0 0.0
  %99 = vmatprep.subr.mxu0 0.0
  %100 = vmatpush1.msra.mxu0 0.0
  %101 = vmatprep.subr.mxu0 0.0
  %102 = vmatpush1.msra.mxu0 0.0
  %103 = vmatprep.subr.mxu0 0.0
  %104 = vmatpush1.msra.mxu0 0.0
  %105 = vmatprep.subr.mxu0 0.0
  %106 = vmatpush1.msra.mxu0 0.0
  %107 = vmatprep.subr.mxu0 0.0
  %108 = vmatpush1.msra.mxu0 0.0
  %109 = vmatprep.subr.mxu0 0.0
  %110 = vmatpush1.msra.mxu0 0.0
  %111 = vmatprep.subr.mxu0 0.0
  %112 = vmatpush1.msra.mxu0 0.0
  %113 = vmatprep.subr.mxu0 0.0
  %114 = vmatpush1.msra.mxu0 0.0
  %115 = vmatprep.subr.mxu0 0.0
  %116 = vmatpush1.msra.mxu0 0.0
  %117 = vmatprep.subr.mxu0 0.0
  %118 = vmatpush1.msra.mxu0 0.0
  %119 = vmatprep.subr.mxu0 0.0
  %120 = vmatpush1.msra.mxu0 0.0
  %121 = vmatprep.mubr.f32.mxu0 0.0
  %122 = vmatmul.mubr.f32.gmra.mrb[0].mxu0 %v55
  %v123 = vpop.f32.mrb[0].mxu0
  %v124 = vadd.f32 %v51, %v123
  %v125 = vpop.f32.mrb[0].mxu0
  %v126 = vadd.f32 %v51, %v125
  %127 = vdwg.mxu0
  %v128 = vmax.f32 %v44, 0.0
  %v129 = vmax.f32 %v45, 0.0
  %130 = vrot.lane.b32.xlu0 %v128, 1
  %v131 = vpop.permute.xlu0 %130
  %132 = vrot.lane.b32.xlu0 %v129, 1
  %v133 = vpop.permute.xlu0 %132
  %v134 = vlaneseq
  %v135 = vand.u32 %v134, 127
  %vm136 = vcmp.lt.s32.totalorder %v135, 1
  %v137 = vsel %vm136, %v131, %v133
  %v138 = vsel %vm136, %v133, %v131
  %139 = vrot.lane.b32.xlu0 %v128, 127
  %v140 = vpop.permute.xlu0 %139
  %141 = vrot.lane.b32.xlu0 %v129, 127
  %v142 = vpop.permute.xlu0 %141
  %vm143 = vcmp.lt.s32.totalorder %v135, 127
  %v144 = vsel %vm143, %v140, %v142
  %v145 = vsel %vm143, %v142, %v140
  %v146 = vld [vmem:[%s3] sm:$0xff]
  %vm147 = vcmask 195584
  %v149 = vsel %vm147, %v146, 0
  %151 = vmatprep.subr.mxu0 %v137
  %152 = vmatpush1.msra.mxu0 %v138
  %153 = vmatprep.subr.mxu0 %v129
  %154 = vmatpush1.msra.mxu0 %v128
  %155 = vmatprep.subr.mxu0 %v145
  %156 = vmatpush1.msra.mxu0 %v144
  %157 = vmatprep.subr.mxu0 0.0
  %158 = vmatpush1.msra.mxu0 0.0
  %159 = vmatprep.subr.mxu0 0.0
  %160 = vmatpush1.msra.mxu0 0.0
  %161 = vmatprep.subr.mxu0 0.0
  %162 = vmatpush1.msra.mxu0 0.0
  %163 = vmatprep.subr.mxu0 0.0
  %164 = vmatpush1.msra.mxu0 0.0
  %165 = vmatprep.subr.mxu0 0.0
  %166 = vmatpush1.msra.mxu0 0.0
  %167 = vmatprep.subr.mxu0 0.0
  %168 = vmatpush1.msra.mxu0 0.0
  %169 = vmatprep.subr.mxu0 0.0
  %170 = vmatpush1.msra.mxu0 0.0
  %171 = vmatprep.subr.mxu0 0.0
  %172 = vmatpush1.msra.mxu0 0.0
  %173 = vmatprep.subr.mxu0 0.0
  %174 = vmatpush1.msra.mxu0 0.0
  %175 = vmatprep.subr.mxu0 0.0
  %176 = vmatpush1.msra.mxu0 0.0
  %177 = vmatprep.subr.mxu0 0.0
  %178 = vmatpush1.msra.mxu0 0.0
  %179 = vmatprep.subr.mxu0 0.0
  %180 = vmatpush1.msra.mxu0 0.0
  %181 = vmatprep.subr.mxu0 0.0
  %182 = vmatpush1.msra.mxu0 0.0
  %183 = vmatprep.subr.mxu0 0.0
  %184 = vmatpush1.msra.mxu0 0.0
  %185 = vmatprep.subr.mxu0 0.0
  %186 = vmatpush1.msra.mxu0 0.0
  %187 = vmatprep.subr.mxu0 0.0
  %188 = vmatpush1.msra.mxu0 0.0
  %189 = vmatprep.subr.mxu0 0.0
  %190 = vmatpush1.msra.mxu0 0.0
  %191 = vmatprep.subr.mxu0 0.0
  %192 = vmatpush1.msra.mxu0 0.0
  %193 = vmatprep.subr.mxu0 0.0
  %194 = vmatpush1.msra.mxu0 0.0
  %195 = vmatprep.subr.mxu0 0.0
  %196 = vmatpush1.msra.mxu0 0.0
  %197 = vmatprep.subr.mxu0 0.0
  %198 = vmatpush1.msra.mxu0 0.0
  %199 = vmatprep.subr.mxu0 0.0
  %200 = vmatpush1.msra.mxu0 0.0
  %201 = vmatprep.subr.mxu0 0.0
  %202 = vmatpush1.msra.mxu0 0.0
  %203 = vmatprep.subr.mxu0 0.0
  %204 = vmatpush1.msra.mxu0 0.0
  %205 = vmatprep.subr.mxu0 0.0
  %206 = vmatpush1.msra.mxu0 0.0
  %207 = vmatprep.subr.mxu0 0.0
  %208 = vmatpush1.msra.mxu0 0.0
  %209 = vmatprep.subr.mxu0 0.0
  %210 = vmatpush1.msra.mxu0 0.0
  %211 = vmatprep.subr.mxu0 0.0
  %212 = vmatpush1.msra.mxu0 0.0
  %213 = vmatprep.subr.mxu0 0.0
  %214 = vmatpush1.msra.mxu0 0.0
  %215 = vmatprep.mubr.f32.mxu0 0.0
  %216 = vmatmul.mubr.f32.gmra.mrb[0].mxu0 %v149
  %v217 = vpop.f32.mrb[0].mxu0
  %v218 = vadd.f32 0.0, %v217
  %v219 = vpop.f32.mrb[0].mxu0
  %v220 = vadd.f32 0.0, %v219
  %221 = vdwg.mxu0
  %s222 = scalar_lea.vmem %s3, 8
  %v223 = vld [vmem:[%s222] sm:$0xff]
  %s224 = scalar_lea.vmem %s3, 16
  %v225 = vld [vmem:[%s224] sm:$0xff]
  %v227 = vsel %vm147, %v225, 0
  %229 = vmatprep.subr.mxu0 %v137
  %230 = vmatpush1.msra.mxu0 %v138
  %231 = vmatprep.subr.mxu0 %v129
  %232 = vmatpush1.msra.mxu0 %v128
  %233 = vmatprep.subr.mxu0 %v145
  %234 = vmatpush1.msra.mxu0 %v144
  %235 = vmatprep.subr.mxu0 0.0
  %236 = vmatpush1.msra.mxu0 0.0
  %237 = vmatprep.subr.mxu0 0.0
  %238 = vmatpush1.msra.mxu0 0.0
  %239 = vmatprep.subr.mxu0 0.0
  %240 = vmatpush1.msra.mxu0 0.0
  %241 = vmatprep.subr.mxu0 0.0
  %242 = vmatpush1.msra.mxu0 0.0
  %243 = vmatprep.subr.mxu0 0.0
  %244 = vmatpush1.msra.mxu0 0.0
  %245 = vmatprep.subr.mxu0 0.0
  %246 = vmatpush1.msra.mxu0 0.0
  %247 = vmatprep.subr.mxu0 0.0
  %248 = vmatpush1.msra.mxu0 0.0
  %249 = vmatprep.subr.mxu0 0.0
  %250 = vmatpush1.msra.mxu0 0.0
  %251 = vmatprep.subr.mxu0 0.0
  %252 = vmatpush1.msra.mxu0 0.0
  %253 = vmatprep.subr.mxu0 0.0
  %254 = vmatpush1.msra.mxu0 0.0
  %255 = vmatprep.subr.mxu0 0.0
  %256 = vmatpush1.msra.mxu0 0.0
  %257 = vmatprep.subr.mxu0 0.0
  %258 = vmatpush1.msra.mxu0 0.0
  %259 = vmatprep.subr.mxu0 0.0
  %260 = vmatpush1.msra.mxu0 0.0
  %261 = vmatprep.subr.mxu0 0.0
  %262 = vmatpush1.msra.mxu0 0.0
  %263 = vmatprep.subr.mxu0 0.0
  %264 = vmatpush1.msra.mxu0 0.0
  %265 = vmatprep.subr.mxu0 0.0
  %266 = vmatpush1.msra.mxu0 0.0
  %267 = vmatprep.subr.mxu0 0.0
  %268 = vmatpush1.msra.mxu0 0.0
  %269 = vmatprep.subr.mxu0 0.0
  %270 = vmatpush1.msra.mxu0 0.0
  %271 = vmatprep.subr.mxu0 0.0
  %272 = vmatpush1.msra.mxu0 0.0
  %273 = vmatprep.subr.mxu0 0.0
  %274 = vmatpush1.msra.mxu0 0.0
  %275 = vmatprep.subr.mxu0 0.0
  %276 = vmatpush1.msra.mxu0 0.0
  %277 = vmatprep.subr.mxu0 0.0
  %278 = vmatpush1.msra.mxu0 0.0
  %279 = vmatprep.subr.mxu0 0.0
  %280 = vmatpush1.msra.mxu0 0.0
  %281 = vmatprep.subr.mxu0 0.0
  %282 = vmatpush1.msra.mxu0 0.0
  %283 = vmatprep.subr.mxu0 0.0
  %284 = vmatpush1.msra.mxu0 0.0
  %285 = vmatprep.subr.mxu0 0.0
  %286 = vmatpush1.msra.mxu0 0.0
  %287 = vmatprep.subr.mxu0 0.0
  %288 = vmatpush1.msra.mxu0 0.0
  %289 = vmatprep.subr.mxu0 0.0
  %290 = vmatpush1.msra.mxu0 0.0
  %291 = vmatprep.subr.mxu0 0.0
  %292 = vmatpush1.msra.mxu0 0.0
  %293 = vmatprep.mubr.f32.mxu0 0.0
  %294 = vmatmul.mubr.f32.gmra.mrb[0].mxu0 %v227
  %v295 = vpop.f32.mrb[0].mxu0
  %v296 = vadd.f32 0.0, %v295
  %v297 = vpop.f32.mrb[0].mxu0
  %v298 = vadd.f32 0.0, %v297
  %299 = vdwg.mxu0
  %300 = vrot.lane.b32.xlu0 %v218, 10
  %v301 = vpop.permute.xlu0 %300
  %302 = vrot.lane.b32.xlu0 %v220, 10
  %v303 = vpop.permute.xlu0 %302
  %vm304 = vcmp.lt.s32.totalorder %v135, 10
  %v305 = vsel %vm304, %v301, %v303
  %v306 = vsel %vm304, %v303, %v301
  %v308 = vsel %vm147, %v223, 0
  %310 = vmatprep.subr.mxu0 %v137
  %311 = vmatpush1.msra.mxu0 %v138
  %312 = vmatprep.subr.mxu0 %v129
  %313 = vmatpush1.msra.mxu0 %v128
  %314 = vmatprep.subr.mxu0 %v145
  %315 = vmatpush1.msra.mxu0 %v144
  %316 = vmatprep.subr.mxu0 0.0
  %317 = vmatpush1.msra.mxu0 0.0
  %318 = vmatprep.subr.mxu0 0.0
  %319 = vmatpush1.msra.mxu0 0.0
  %320 = vmatprep.subr.mxu0 0.0
  %321 = vmatpush1.msra.mxu0 0.0
  %322 = vmatprep.subr.mxu0 0.0
  %323 = vmatpush1.msra.mxu0 0.0
  %324 = vmatprep.subr.mxu0 0.0
  %325 = vmatpush1.msra.mxu0 0.0
  %326 = vmatprep.subr.mxu0 0.0
  %327 = vmatpush1.msra.mxu0 0.0
  %328 = vmatprep.subr.mxu0 0.0
  %329 = vmatpush1.msra.mxu0 0.0
  %330 = vmatprep.subr.mxu0 0.0
  %331 = vmatpush1.msra.mxu0 0.0
  %332 = vmatprep.subr.mxu0 0.0
  %333 = vmatpush1.msra.mxu0 0.0
  %334 = vmatprep.subr.mxu0 0.0
  %335 = vmatpush1.msra.mxu0 0.0
  %336 = vmatprep.subr.mxu0 0.0
  %337 = vmatpush1.msra.mxu0 0.0
  %338 = vmatprep.subr.mxu0 0.0
  %339 = vmatpush1.msra.mxu0 0.0
  %340 = vmatprep.subr.mxu0 0.0
  %341 = vmatpush1.msra.mxu0 0.0
  %342 = vmatprep.subr.mxu0 0.0
  %343 = vmatpush1.msra.mxu0 0.0
  %344 = vmatprep.subr.mxu0 0.0
  %345 = vmatpush1.msra.mxu0 0.0
  %346 = vmatprep.subr.mxu0 0.0
  %347 = vmatpush1.msra.mxu0 0.0
  %348 = vmatprep.subr.mxu0 0.0
  %349 = vmatpush1.msra.mxu0 0.0
  %350 = vmatprep.subr.mxu0 0.0
  %351 = vmatpush1.msra.mxu0 0.0
  %352 = vmatprep.subr.mxu0 0.0
  %353 = vmatpush1.msra.mxu0 0.0
  %354 = vmatprep.subr.mxu0 0.0
  %355 = vmatpush1.msra.mxu0 0.0
  %356 = vmatprep.subr.mxu0 0.0
  %357 = vmatpush1.msra.mxu0 0.0
  %358 = vmatprep.subr.mxu0 0.0
  %359 = vmatpush1.msra.mxu0 0.0
  %360 = vmatprep.subr.mxu0 0.0
  %361 = vmatpush1.msra.mxu0 0.0
  %362 = vmatprep.subr.mxu0 0.0
  %363 = vmatpush1.msra.mxu0 0.0
  %364 = vmatprep.subr.mxu0 0.0
  %365 = vmatpush1.msra.mxu0 0.0
  %366 = vmatprep.subr.mxu0 0.0
  %367 = vmatpush1.msra.mxu0 0.0
  %368 = vmatprep.subr.mxu0 0.0
  %369 = vmatpush1.msra.mxu0 0.0
  %370 = vmatprep.subr.mxu0 0.0
  %371 = vmatpush1.msra.mxu0 0.0
  %372 = vmatprep.subr.mxu0 0.0
  %373 = vmatpush1.msra.mxu0 0.0
  %374 = vmatprep.mubr.f32.mxu0 0.0
  %375 = vmatmul.mubr.f32.gmra.mrb[0].mxu0 %v308
  %v376 = vpop.f32.mrb[0].mxu0
  %v377 = vadd.f32 %v306, %v376
  %v378 = vpop.f32.mrb[0].mxu0
  %v379 = vadd.f32 %v305, %v378
  %380 = vdwg.mxu0
  %381 = vrot.lane.b32.xlu0 %v296, 118
  %v382 = vpop.permute.xlu0 %381
  %383 = vrot.lane.b32.xlu0 %v298, 118
  %v384 = vpop.permute.xlu0 %383
  %vm385 = vcmp.lt.s32.totalorder %v135, 118
  %v386 = vsel %vm385, %v382, %v384
  %v387 = vsel %vm385, %v384, %v382
  %v388 = vadd.f32 %v377, %v386
  %v389 = vadd.f32 %v379, %v387
  %s390 = scalar_lea.vmem %s7, 8
  %v391 = vld [vmem:[%s390] sm:$0xff]
  %393 = vset.pattern.permute.xlu0 0
  %394 = vperm.xlu0 %393, %v391
  %v395 = vpop.permute.xlu0 %394
  %v397 = vadd.f32 %v388, %v395
  %v398 = vadd.f32 %v389, %v395
  %v399 = vmax.f32 %v397, 0.0
  %v400 = vmax.f32 %v398, 0.0
  %v402 = vlaneseq
  %v403 = vshrl.u32 %v402, 7
  %v404 = vsub.s32 0, %v403
  %v405 = vrot.slane %v29, %v404
  %v406 = vlaneseq
  %v407 = vshrl.u32 %v406, 7
  %v408 = vsub.s32 1, %v407
  %v409 = vrot.slane %v29, %v408
  %v412 = vmul.f32 %v405, %v399
  %v413 = vmul.f32 %v409, %v400
  %414 = vrot.lane.b32.xlu0 %v412, 1
  %v415 = vpop.permute.xlu0 %414
  %416 = vrot.lane.b32.xlu0 %v413, 1
  %v417 = vpop.permute.xlu0 %416
  %v418 = vsel %vm136, %v415, %v417
  %v419 = vsel %vm136, %v417, %v415
  %420 = vrot.lane.b32.xlu0 %v412, 127
  %v421 = vpop.permute.xlu0 %420
  %422 = vrot.lane.b32.xlu0 %v413, 127
  %v423 = vpop.permute.xlu0 %422
  %v424 = vsel %vm143, %v421, %v423
  %v425 = vsel %vm143, %v423, %v421
  %v426 = vld [vmem:[%s4] sm:$0xff]
  %v428 = vsel %vm147, %v426, 0
  %430 = vmatprep.subr.mxu0 %v418
  %431 = vmatpush1.msra.mxu0 %v419
  %432 = vmatprep.subr.mxu0 %v413
  %433 = vmatpush1.msra.mxu0 %v412
  %434 = vmatprep.subr.mxu0 %v425
  %435 = vmatpush1.msra.mxu0 %v424
  %436 = vmatprep.subr.mxu0 0.0
  %437 = vmatpush1.msra.mxu0 0.0
  %438 = vmatprep.subr.mxu0 0.0
  %439 = vmatpush1.msra.mxu0 0.0
  %440 = vmatprep.subr.mxu0 0.0
  %441 = vmatpush1.msra.mxu0 0.0
  %442 = vmatprep.subr.mxu0 0.0
  %443 = vmatpush1.msra.mxu0 0.0
  %444 = vmatprep.subr.mxu0 0.0
  %445 = vmatpush1.msra.mxu0 0.0
  %446 = vmatprep.subr.mxu0 0.0
  %447 = vmatpush1.msra.mxu0 0.0
  %448 = vmatprep.subr.mxu0 0.0
  %449 = vmatpush1.msra.mxu0 0.0
  %450 = vmatprep.subr.mxu0 0.0
  %451 = vmatpush1.msra.mxu0 0.0
  %452 = vmatprep.subr.mxu0 0.0
  %453 = vmatpush1.msra.mxu0 0.0
  %454 = vmatprep.subr.mxu0 0.0
  %455 = vmatpush1.msra.mxu0 0.0
  %456 = vmatprep.subr.mxu0 0.0
  %457 = vmatpush1.msra.mxu0 0.0
  %458 = vmatprep.subr.mxu0 0.0
  %459 = vmatpush1.msra.mxu0 0.0
  %460 = vmatprep.subr.mxu0 0.0
  %461 = vmatpush1.msra.mxu0 0.0
  %462 = vmatprep.subr.mxu0 0.0
  %463 = vmatpush1.msra.mxu0 0.0
  %464 = vmatprep.subr.mxu0 0.0
  %465 = vmatpush1.msra.mxu0 0.0
  %466 = vmatprep.subr.mxu0 0.0
  %467 = vmatpush1.msra.mxu0 0.0
  %468 = vmatprep.subr.mxu0 0.0
  %469 = vmatpush1.msra.mxu0 0.0
  %470 = vmatprep.subr.mxu0 0.0
  %471 = vmatpush1.msra.mxu0 0.0
  %472 = vmatprep.subr.mxu0 0.0
  %473 = vmatpush1.msra.mxu0 0.0
  %474 = vmatprep.subr.mxu0 0.0
  %475 = vmatpush1.msra.mxu0 0.0
  %476 = vmatprep.subr.mxu0 0.0
  %477 = vmatpush1.msra.mxu0 0.0
  %478 = vmatprep.subr.mxu0 0.0
  %479 = vmatpush1.msra.mxu0 0.0
  %480 = vmatprep.subr.mxu0 0.0
  %481 = vmatpush1.msra.mxu0 0.0
  %482 = vmatprep.subr.mxu0 0.0
  %483 = vmatpush1.msra.mxu0 0.0
  %484 = vmatprep.subr.mxu0 0.0
  %485 = vmatpush1.msra.mxu0 0.0
  %486 = vmatprep.subr.mxu0 0.0
  %487 = vmatpush1.msra.mxu0 0.0
  %488 = vmatprep.subr.mxu0 0.0
  %489 = vmatpush1.msra.mxu0 0.0
  %490 = vmatprep.subr.mxu0 0.0
  %491 = vmatpush1.msra.mxu0 0.0
  %492 = vmatprep.subr.mxu0 0.0
  %493 = vmatpush1.msra.mxu0 0.0
  %494 = vmatprep.mubr.f32.mxu0 0.0
  %495 = vmatmul.mubr.f32.gmra.mrb[0].mxu0 %v428
  %v496 = vpop.f32.mrb[0].mxu0
  %v497 = vadd.f32 0.0, %v496
  %v498 = vpop.f32.mrb[0].mxu0
  %v499 = vadd.f32 0.0, %v498
  %500 = vdwg.mxu0
  %s501 = scalar_lea.vmem %s4, 8
  %v502 = vld [vmem:[%s501] sm:$0xff]
  %s503 = scalar_lea.vmem %s4, 16
  %v504 = vld [vmem:[%s503] sm:$0xff]
  %v506 = vsel %vm147, %v504, 0
  %508 = vmatprep.subr.mxu0 %v418
  %509 = vmatpush1.msra.mxu0 %v419
  %510 = vmatprep.subr.mxu0 %v413
  %511 = vmatpush1.msra.mxu0 %v412
  %512 = vmatprep.subr.mxu0 %v425
  %513 = vmatpush1.msra.mxu0 %v424
  %514 = vmatprep.subr.mxu0 0.0
  %515 = vmatpush1.msra.mxu0 0.0
  %516 = vmatprep.subr.mxu0 0.0
  %517 = vmatpush1.msra.mxu0 0.0
  %518 = vmatprep.subr.mxu0 0.0
  %519 = vmatpush1.msra.mxu0 0.0
  %520 = vmatprep.subr.mxu0 0.0
  %521 = vmatpush1.msra.mxu0 0.0
  %522 = vmatprep.subr.mxu0 0.0
  %523 = vmatpush1.msra.mxu0 0.0
  %524 = vmatprep.subr.mxu0 0.0
  %525 = vmatpush1.msra.mxu0 0.0
  %526 = vmatprep.subr.mxu0 0.0
  %527 = vmatpush1.msra.mxu0 0.0
  %528 = vmatprep.subr.mxu0 0.0
  %529 = vmatpush1.msra.mxu0 0.0
  %530 = vmatprep.subr.mxu0 0.0
  %531 = vmatpush1.msra.mxu0 0.0
  %532 = vmatprep.subr.mxu0 0.0
  %533 = vmatpush1.msra.mxu0 0.0
  %534 = vmatprep.subr.mxu0 0.0
  %535 = vmatpush1.msra.mxu0 0.0
  %536 = vmatprep.subr.mxu0 0.0
  %537 = vmatpush1.msra.mxu0 0.0
  %538 = vmatprep.subr.mxu0 0.0
  %539 = vmatpush1.msra.mxu0 0.0
  %540 = vmatprep.subr.mxu0 0.0
  %541 = vmatpush1.msra.mxu0 0.0
  %542 = vmatprep.subr.mxu0 0.0
  %543 = vmatpush1.msra.mxu0 0.0
  %544 = vmatprep.subr.mxu0 0.0
  %545 = vmatpush1.msra.mxu0 0.0
  %546 = vmatprep.subr.mxu0 0.0
  %547 = vmatpush1.msra.mxu0 0.0
  %548 = vmatprep.subr.mxu0 0.0
  %549 = vmatpush1.msra.mxu0 0.0
  %550 = vmatprep.subr.mxu0 0.0
  %551 = vmatpush1.msra.mxu0 0.0
  %552 = vmatprep.subr.mxu0 0.0
  %553 = vmatpush1.msra.mxu0 0.0
  %554 = vmatprep.subr.mxu0 0.0
  %555 = vmatpush1.msra.mxu0 0.0
  %556 = vmatprep.subr.mxu0 0.0
  %557 = vmatpush1.msra.mxu0 0.0
  %558 = vmatprep.subr.mxu0 0.0
  %559 = vmatpush1.msra.mxu0 0.0
  %560 = vmatprep.subr.mxu0 0.0
  %561 = vmatpush1.msra.mxu0 0.0
  %562 = vmatprep.subr.mxu0 0.0
  %563 = vmatpush1.msra.mxu0 0.0
  %564 = vmatprep.subr.mxu0 0.0
  %565 = vmatpush1.msra.mxu0 0.0
  %566 = vmatprep.subr.mxu0 0.0
  %567 = vmatpush1.msra.mxu0 0.0
  %568 = vmatprep.subr.mxu0 0.0
  %569 = vmatpush1.msra.mxu0 0.0
  %570 = vmatprep.subr.mxu0 0.0
  %571 = vmatpush1.msra.mxu0 0.0
  %572 = vmatprep.mubr.f32.mxu0 0.0
  %573 = vmatmul.mubr.f32.gmra.mrb[0].mxu0 %v506
  %v574 = vpop.f32.mrb[0].mxu0
  %v575 = vadd.f32 0.0, %v574
  %v576 = vpop.f32.mrb[0].mxu0
  %v577 = vadd.f32 0.0, %v576
  %578 = vdwg.mxu0
  %579 = vrot.lane.b32.xlu0 %v497, 10
  %v580 = vpop.permute.xlu0 %579
  %581 = vrot.lane.b32.xlu0 %v499, 10
  %v582 = vpop.permute.xlu0 %581
  %v583 = vsel %vm304, %v580, %v582
  %v584 = vsel %vm304, %v582, %v580
  %v586 = vsel %vm147, %v502, 0
  %588 = vmatprep.subr.mxu0 %v418
  %589 = vmatpush1.msra.mxu0 %v419
  %590 = vmatprep.subr.mxu0 %v413
  %591 = vmatpush1.msra.mxu0 %v412
  %592 = vmatprep.subr.mxu0 %v425
  %593 = vmatpush1.msra.mxu0 %v424
  %594 = vmatprep.subr.mxu0 0.0
  %595 = vmatpush1.msra.mxu0 0.0
  %596 = vmatprep.subr.mxu0 0.0
  %597 = vmatpush1.msra.mxu0 0.0
  %598 = vmatprep.subr.mxu0 0.0
  %599 = vmatpush1.msra.mxu0 0.0
  %600 = vmatprep.subr.mxu0 0.0
  %601 = vmatpush1.msra.mxu0 0.0
  %602 = vmatprep.subr.mxu0 0.0
  %603 = vmatpush1.msra.mxu0 0.0
  %604 = vmatprep.subr.mxu0 0.0
  %605 = vmatpush1.msra.mxu0 0.0
  %606 = vmatprep.subr.mxu0 0.0
  %607 = vmatpush1.msra.mxu0 0.0
  %608 = vmatprep.subr.mxu0 0.0
  %609 = vmatpush1.msra.mxu0 0.0
  %610 = vmatprep.subr.mxu0 0.0
  %611 = vmatpush1.msra.mxu0 0.0
  %612 = vmatprep.subr.mxu0 0.0
  %613 = vmatpush1.msra.mxu0 0.0
  %614 = vmatprep.subr.mxu0 0.0
  %615 = vmatpush1.msra.mxu0 0.0
  %616 = vmatprep.subr.mxu0 0.0
  %617 = vmatpush1.msra.mxu0 0.0
  %618 = vmatprep.subr.mxu0 0.0
  %619 = vmatpush1.msra.mxu0 0.0
  %620 = vmatprep.subr.mxu0 0.0
  %621 = vmatpush1.msra.mxu0 0.0
  %622 = vmatprep.subr.mxu0 0.0
  %623 = vmatpush1.msra.mxu0 0.0
  %624 = vmatprep.subr.mxu0 0.0
  %625 = vmatpush1.msra.mxu0 0.0
  %626 = vmatprep.subr.mxu0 0.0
  %627 = vmatpush1.msra.mxu0 0.0
  %628 = vmatprep.subr.mxu0 0.0
  %629 = vmatpush1.msra.mxu0 0.0
  %630 = vmatprep.subr.mxu0 0.0
  %631 = vmatpush1.msra.mxu0 0.0
  %632 = vmatprep.subr.mxu0 0.0
  %633 = vmatpush1.msra.mxu0 0.0
  %634 = vmatprep.subr.mxu0 0.0
  %635 = vmatpush1.msra.mxu0 0.0
  %636 = vmatprep.subr.mxu0 0.0
  %637 = vmatpush1.msra.mxu0 0.0
  %638 = vmatprep.subr.mxu0 0.0
  %639 = vmatpush1.msra.mxu0 0.0
  %640 = vmatprep.subr.mxu0 0.0
  %641 = vmatpush1.msra.mxu0 0.0
  %642 = vmatprep.subr.mxu0 0.0
  %643 = vmatpush1.msra.mxu0 0.0
  %644 = vmatprep.subr.mxu0 0.0
  %645 = vmatpush1.msra.mxu0 0.0
  %646 = vmatprep.subr.mxu0 0.0
  %647 = vmatpush1.msra.mxu0 0.0
  %648 = vmatprep.subr.mxu0 0.0
  %649 = vmatpush1.msra.mxu0 0.0
  %650 = vmatprep.subr.mxu0 0.0
  %651 = vmatpush1.msra.mxu0 0.0
  %652 = vmatprep.mubr.f32.mxu0 0.0
  %653 = vmatmul.mubr.f32.gmra.mrb[0].mxu0 %v586
  %v654 = vpop.f32.mrb[0].mxu0
  %v655 = vadd.f32 %v584, %v654
  %v656 = vpop.f32.mrb[0].mxu0
  %v657 = vadd.f32 %v583, %v656
  %658 = vdwg.mxu0
  %659 = vrot.lane.b32.xlu0 %v575, 118
  %v660 = vpop.permute.xlu0 %659
  %661 = vrot.lane.b32.xlu0 %v577, 118
  %v662 = vpop.permute.xlu0 %661
  %v663 = vsel %vm385, %v660, %v662
  %v664 = vsel %vm385, %v662, %v660
  %v665 = vadd.f32 %v655, %v663
  %v666 = vadd.f32 %v657, %v664
  %s667 = scalar_lea.vmem %s7, 16
  %v668 = vld [vmem:[%s667] sm:$0xff]
  %670 = vset.pattern.permute.xlu0 0
  %671 = vperm.xlu0 %670, %v668
  %v672 = vpop.permute.xlu0 %671
  %v674 = vadd.f32 %v665, %v672
  %v675 = vadd.f32 %v666, %v672
  %v676 = vadd.f32 %v124, %v674
  %v677 = vadd.f32 %v126, %v675
  %v678 = vmax.f32 %v676, 0.0
  %v679 = vmax.f32 %v677, 0.0
  %v680 = vmul.f32 %v405, %v678
  %v681 = vmul.f32 %v409, %v679
  %682 = vrot.lane.b32.xlu0 %v680, 1
  %v683 = vpop.permute.xlu0 %682
  %684 = vrot.lane.b32.xlu0 %v681, 1
  %v685 = vpop.permute.xlu0 %684
  %v686 = vsel %vm136, %v683, %v685
  %v687 = vsel %vm136, %v685, %v683
  %688 = vrot.lane.b32.xlu0 %v680, 127
  %v689 = vpop.permute.xlu0 %688
  %690 = vrot.lane.b32.xlu0 %v681, 127
  %v691 = vpop.permute.xlu0 %690
  %v692 = vsel %vm143, %v689, %v691
  %v693 = vsel %vm143, %v691, %v689
  %v694 = vld [vmem:[%s5] sm:$0xff]
  %v696 = vsel %vm147, %v694, 0
  %698 = vmatprep.subr.mxu0 %v686
  %699 = vmatpush1.msra.mxu0 %v687
  %700 = vmatprep.subr.mxu0 %v681
  %701 = vmatpush1.msra.mxu0 %v680
  %702 = vmatprep.subr.mxu0 %v693
  %703 = vmatpush1.msra.mxu0 %v692
  %704 = vmatprep.subr.mxu0 0.0
  %705 = vmatpush1.msra.mxu0 0.0
  %706 = vmatprep.subr.mxu0 0.0
  %707 = vmatpush1.msra.mxu0 0.0
  %708 = vmatprep.subr.mxu0 0.0
  %709 = vmatpush1.msra.mxu0 0.0
  %710 = vmatprep.subr.mxu0 0.0
  %711 = vmatpush1.msra.mxu0 0.0
  %712 = vmatprep.subr.mxu0 0.0
  %713 = vmatpush1.msra.mxu0 0.0
  %714 = vmatprep.subr.mxu0 0.0
  %715 = vmatpush1.msra.mxu0 0.0
  %716 = vmatprep.subr.mxu0 0.0
  %717 = vmatpush1.msra.mxu0 0.0
  %718 = vmatprep.subr.mxu0 0.0
  %719 = vmatpush1.msra.mxu0 0.0
  %720 = vmatprep.subr.mxu0 0.0
  %721 = vmatpush1.msra.mxu0 0.0
  %722 = vmatprep.subr.mxu0 0.0
  %723 = vmatpush1.msra.mxu0 0.0
  %724 = vmatprep.subr.mxu0 0.0
  %725 = vmatpush1.msra.mxu0 0.0
  %726 = vmatprep.subr.mxu0 0.0
  %727 = vmatpush1.msra.mxu0 0.0
  %728 = vmatprep.subr.mxu0 0.0
  %729 = vmatpush1.msra.mxu0 0.0
  %730 = vmatprep.subr.mxu0 0.0
  %731 = vmatpush1.msra.mxu0 0.0
  %732 = vmatprep.subr.mxu0 0.0
  %733 = vmatpush1.msra.mxu0 0.0
  %734 = vmatprep.subr.mxu0 0.0
  %735 = vmatpush1.msra.mxu0 0.0
  %736 = vmatprep.subr.mxu0 0.0
  %737 = vmatpush1.msra.mxu0 0.0
  %738 = vmatprep.subr.mxu0 0.0
  %739 = vmatpush1.msra.mxu0 0.0
  %740 = vmatprep.subr.mxu0 0.0
  %741 = vmatpush1.msra.mxu0 0.0
  %742 = vmatprep.subr.mxu0 0.0
  %743 = vmatpush1.msra.mxu0 0.0
  %744 = vmatprep.subr.mxu0 0.0
  %745 = vmatpush1.msra.mxu0 0.0
  %746 = vmatprep.subr.mxu0 0.0
  %747 = vmatpush1.msra.mxu0 0.0
  %748 = vmatprep.subr.mxu0 0.0
  %749 = vmatpush1.msra.mxu0 0.0
  %750 = vmatprep.subr.mxu0 0.0
  %751 = vmatpush1.msra.mxu0 0.0
  %752 = vmatprep.subr.mxu0 0.0
  %753 = vmatpush1.msra.mxu0 0.0
  %754 = vmatprep.subr.mxu0 0.0
  %755 = vmatpush1.msra.mxu0 0.0
  %756 = vmatprep.subr.mxu0 0.0
  %757 = vmatpush1.msra.mxu0 0.0
  %758 = vmatprep.subr.mxu0 0.0
  %759 = vmatpush1.msra.mxu0 0.0
  %760 = vmatprep.subr.mxu0 0.0
  %761 = vmatpush1.msra.mxu0 0.0
  %762 = vmatprep.mubr.f32.mxu0 0.0
  %763 = vmatmul.mubr.f32.gmra.mrb[0].mxu0 %v696
  %v764 = vpop.f32.mrb[0].mxu0
  %v765 = vadd.f32 0.0, %v764
  %v766 = vpop.f32.mrb[0].mxu0
  %v767 = vadd.f32 0.0, %v766
  %768 = vdwg.mxu0
  %s769 = scalar_lea.vmem %s5, 8
  %v770 = vld [vmem:[%s769] sm:$0xff]
  %s771 = scalar_lea.vmem %s5, 16
  %v772 = vld [vmem:[%s771] sm:$0xff]
  %v774 = vsel %vm147, %v772, 0
  %776 = vmatprep.subr.mxu0 %v686
  %777 = vmatpush1.msra.mxu0 %v687
  %778 = vmatprep.subr.mxu0 %v681
  %779 = vmatpush1.msra.mxu0 %v680
  %780 = vmatprep.subr.mxu0 %v693
  %781 = vmatpush1.msra.mxu0 %v692
  %782 = vmatprep.subr.mxu0 0.0
  %783 = vmatpush1.msra.mxu0 0.0
  %784 = vmatprep.subr.mxu0 0.0
  %785 = vmatpush1.msra.mxu0 0.0
  %786 = vmatprep.subr.mxu0 0.0
  %787 = vmatpush1.msra.mxu0 0.0
  %788 = vmatprep.subr.mxu0 0.0
  %789 = vmatpush1.msra.mxu0 0.0
  %790 = vmatprep.subr.mxu0 0.0
  %791 = vmatpush1.msra.mxu0 0.0
  %792 = vmatprep.subr.mxu0 0.0
  %793 = vmatpush1.msra.mxu0 0.0
  %794 = vmatprep.subr.mxu0 0.0
  %795 = vmatpush1.msra.mxu0 0.0
  %796 = vmatprep.subr.mxu0 0.0
  %797 = vmatpush1.msra.mxu0 0.0
  %798 = vmatprep.subr.mxu0 0.0
  %799 = vmatpush1.msra.mxu0 0.0
  %800 = vmatprep.subr.mxu0 0.0
  %801 = vmatpush1.msra.mxu0 0.0
  %802 = vmatprep.subr.mxu0 0.0
  %803 = vmatpush1.msra.mxu0 0.0
  %804 = vmatprep.subr.mxu0 0.0
  %805 = vmatpush1.msra.mxu0 0.0
  %806 = vmatprep.subr.mxu0 0.0
  %807 = vmatpush1.msra.mxu0 0.0
  %808 = vmatprep.subr.mxu0 0.0
  %809 = vmatpush1.msra.mxu0 0.0
  %810 = vmatprep.subr.mxu0 0.0
  %811 = vmatpush1.msra.mxu0 0.0
  %812 = vmatprep.subr.mxu0 0.0
  %813 = vmatpush1.msra.mxu0 0.0
  %814 = vmatprep.subr.mxu0 0.0
  %815 = vmatpush1.msra.mxu0 0.0
  %816 = vmatprep.subr.mxu0 0.0
  %817 = vmatpush1.msra.mxu0 0.0
  %818 = vmatprep.subr.mxu0 0.0
  %819 = vmatpush1.msra.mxu0 0.0
  %820 = vmatprep.subr.mxu0 0.0
  %821 = vmatpush1.msra.mxu0 0.0
  %822 = vmatprep.subr.mxu0 0.0
  %823 = vmatpush1.msra.mxu0 0.0
  %824 = vmatprep.subr.mxu0 0.0
  %825 = vmatpush1.msra.mxu0 0.0
  %826 = vmatprep.subr.mxu0 0.0
  %827 = vmatpush1.msra.mxu0 0.0
  %828 = vmatprep.subr.mxu0 0.0
  %829 = vmatpush1.msra.mxu0 0.0
  %830 = vmatprep.subr.mxu0 0.0
  %831 = vmatpush1.msra.mxu0 0.0
  %832 = vmatprep.subr.mxu0 0.0
  %833 = vmatpush1.msra.mxu0 0.0
  %834 = vmatprep.subr.mxu0 0.0
  %835 = vmatpush1.msra.mxu0 0.0
  %836 = vmatprep.subr.mxu0 0.0
  %837 = vmatpush1.msra.mxu0 0.0
  %838 = vmatprep.subr.mxu0 0.0
  %839 = vmatpush1.msra.mxu0 0.0
  %840 = vmatprep.mubr.f32.mxu0 0.0
  %841 = vmatmul.mubr.f32.gmra.mrb[0].mxu0 %v774
  %v842 = vpop.f32.mrb[0].mxu0
  %v843 = vadd.f32 0.0, %v842
  %v844 = vpop.f32.mrb[0].mxu0
  %v845 = vadd.f32 0.0, %v844
  %846 = vdwg.mxu0
  %847 = vrot.lane.b32.xlu0 %v765, 10
  %v848 = vpop.permute.xlu0 %847
  %849 = vrot.lane.b32.xlu0 %v767, 10
  %v850 = vpop.permute.xlu0 %849
  %v851 = vsel %vm304, %v848, %v850
  %v852 = vsel %vm304, %v850, %v848
  %v854 = vsel %vm147, %v770, 0
  %856 = vmatprep.subr.mxu0 %v686
  %857 = vmatpush1.msra.mxu0 %v687
  %858 = vmatprep.subr.mxu0 %v681
  %859 = vmatpush1.msra.mxu0 %v680
  %860 = vmatprep.subr.mxu0 %v693
  %861 = vmatpush1.msra.mxu0 %v692
  %862 = vmatprep.subr.mxu0 0.0
  %863 = vmatpush1.msra.mxu0 0.0
  %864 = vmatprep.subr.mxu0 0.0
  %865 = vmatpush1.msra.mxu0 0.0
  %866 = vmatprep.subr.mxu0 0.0
  %867 = vmatpush1.msra.mxu0 0.0
  %868 = vmatprep.subr.mxu0 0.0
  %869 = vmatpush1.msra.mxu0 0.0
  %870 = vmatprep.subr.mxu0 0.0
  %871 = vmatpush1.msra.mxu0 0.0
  %872 = vmatprep.subr.mxu0 0.0
  %873 = vmatpush1.msra.mxu0 0.0
  %874 = vmatprep.subr.mxu0 0.0
  %875 = vmatpush1.msra.mxu0 0.0
  %876 = vmatprep.subr.mxu0 0.0
  %877 = vmatpush1.msra.mxu0 0.0
  %878 = vmatprep.subr.mxu0 0.0
  %879 = vmatpush1.msra.mxu0 0.0
  %880 = vmatprep.subr.mxu0 0.0
  %881 = vmatpush1.msra.mxu0 0.0
  %882 = vmatprep.subr.mxu0 0.0
  %883 = vmatpush1.msra.mxu0 0.0
  %884 = vmatprep.subr.mxu0 0.0
  %885 = vmatpush1.msra.mxu0 0.0
  %886 = vmatprep.subr.mxu0 0.0
  %887 = vmatpush1.msra.mxu0 0.0
  %888 = vmatprep.subr.mxu0 0.0
  %889 = vmatpush1.msra.mxu0 0.0
  %890 = vmatprep.subr.mxu0 0.0
  %891 = vmatpush1.msra.mxu0 0.0
  %892 = vmatprep.subr.mxu0 0.0
  %893 = vmatpush1.msra.mxu0 0.0
  %894 = vmatprep.subr.mxu0 0.0
  %895 = vmatpush1.msra.mxu0 0.0
  %896 = vmatprep.subr.mxu0 0.0
  %897 = vmatpush1.msra.mxu0 0.0
  %898 = vmatprep.subr.mxu0 0.0
  %899 = vmatpush1.msra.mxu0 0.0
  %900 = vmatprep.subr.mxu0 0.0
  %901 = vmatpush1.msra.mxu0 0.0
  %902 = vmatprep.subr.mxu0 0.0
  %903 = vmatpush1.msra.mxu0 0.0
  %904 = vmatprep.subr.mxu0 0.0
  %905 = vmatpush1.msra.mxu0 0.0
  %906 = vmatprep.subr.mxu0 0.0
  %907 = vmatpush1.msra.mxu0 0.0
  %908 = vmatprep.subr.mxu0 0.0
  %909 = vmatpush1.msra.mxu0 0.0
  %910 = vmatprep.subr.mxu0 0.0
  %911 = vmatpush1.msra.mxu0 0.0
  %912 = vmatprep.subr.mxu0 0.0
  %913 = vmatpush1.msra.mxu0 0.0
  %914 = vmatprep.subr.mxu0 0.0
  %915 = vmatpush1.msra.mxu0 0.0
  %916 = vmatprep.subr.mxu0 0.0
  %917 = vmatpush1.msra.mxu0 0.0
  %918 = vmatprep.subr.mxu0 0.0
  %919 = vmatpush1.msra.mxu0 0.0
  %920 = vmatprep.mubr.f32.mxu0 0.0
  %921 = vmatmul.mubr.f32.gmra.mrb[0].mxu0 %v854
  %v922 = vpop.f32.mrb[0].mxu0
  %v923 = vadd.f32 %v852, %v922
  %v924 = vpop.f32.mrb[0].mxu0
  %v925 = vadd.f32 %v851, %v924
  %926 = vdwg.mxu0
  %927 = vrot.lane.b32.xlu0 %v843, 118
  %v928 = vpop.permute.xlu0 %927
  %929 = vrot.lane.b32.xlu0 %v845, 118
  %v930 = vpop.permute.xlu0 %929
  %v931 = vsel %vm385, %v928, %v930
  %v932 = vsel %vm385, %v930, %v928
  %v933 = vadd.f32 %v923, %v931
  %v934 = vadd.f32 %v925, %v932
  %s935 = scalar_lea.vmem %s7, 24
  %v936 = vld [vmem:[%s935] sm:$0xff]
  %938 = vset.pattern.permute.xlu0 0
  %939 = vperm.xlu0 %938, %v936
  %v940 = vpop.permute.xlu0 %939
  %v942 = vadd.f32 %v933, %v940
  %v943 = vadd.f32 %v934, %v940
  %v944 = vmax.f32 %v942, 0.0
  %v945 = vmax.f32 %v943, 0.0
  %v946 = vmul.f32 %v405, %v944
  %v947 = vmul.f32 %v409, %v945
  %948 = vrot.lane.b32.xlu0 %v946, 1
  %v949 = vpop.permute.xlu0 %948
  %950 = vrot.lane.b32.xlu0 %v947, 1
  %v951 = vpop.permute.xlu0 %950
  %v952 = vsel %vm136, %v949, %v951
  %v953 = vsel %vm136, %v951, %v949
  %954 = vrot.lane.b32.xlu0 %v946, 127
  %v955 = vpop.permute.xlu0 %954
  %956 = vrot.lane.b32.xlu0 %v947, 127
  %v957 = vpop.permute.xlu0 %956
  %v958 = vsel %vm143, %v955, %v957
  %v959 = vsel %vm143, %v957, %v955
  %v960 = vld [vmem:[%s6] sm:$0xff]
  %v961 = vld [vmem:[%s6 + $0x8] sm:$0xff]
  %v963 = vsel %vm147, %v960, 0
  %v966 = vsel %vm147, %v961, 0
  %968 = vmatprep.subr.mxu0 %v952
  %969 = vmatpush1.msra.mxu0 %v953
  %970 = vmatprep.subr.mxu0 %v947
  %971 = vmatpush1.msra.mxu0 %v946
  %972 = vmatprep.subr.mxu0 %v959
  %973 = vmatpush1.msra.mxu0 %v958
  %974 = vmatprep.subr.mxu0 0.0
  %975 = vmatpush1.msra.mxu0 0.0
  %976 = vmatprep.subr.mxu0 0.0
  %977 = vmatpush1.msra.mxu0 0.0
  %978 = vmatprep.subr.mxu0 0.0
  %979 = vmatpush1.msra.mxu0 0.0
  %980 = vmatprep.subr.mxu0 0.0
  %981 = vmatpush1.msra.mxu0 0.0
  %982 = vmatprep.subr.mxu0 0.0
  %983 = vmatpush1.msra.mxu0 0.0
  %984 = vmatprep.subr.mxu0 0.0
  %985 = vmatpush1.msra.mxu0 0.0
  %986 = vmatprep.subr.mxu0 0.0
  %987 = vmatpush1.msra.mxu0 0.0
  %988 = vmatprep.subr.mxu0 0.0
  %989 = vmatpush1.msra.mxu0 0.0
  %990 = vmatprep.subr.mxu0 0.0
  %991 = vmatpush1.msra.mxu0 0.0
  %992 = vmatprep.subr.mxu0 0.0
  %993 = vmatpush1.msra.mxu0 0.0
  %994 = vmatprep.subr.mxu0 0.0
  %995 = vmatpush1.msra.mxu0 0.0
  %996 = vmatprep.subr.mxu0 0.0
  %997 = vmatpush1.msra.mxu0 0.0
  %998 = vmatprep.subr.mxu0 0.0
  %999 = vmatpush1.msra.mxu0 0.0
  %1000 = vmatprep.subr.mxu0 0.0
  %1001 = vmatpush1.msra.mxu0 0.0
  %1002 = vmatprep.subr.mxu0 0.0
  %1003 = vmatpush1.msra.mxu0 0.0
  %1004 = vmatprep.subr.mxu0 0.0
  %1005 = vmatpush1.msra.mxu0 0.0
  %1006 = vmatprep.subr.mxu0 0.0
  %1007 = vmatpush1.msra.mxu0 0.0
  %1008 = vmatprep.subr.mxu0 0.0
  %1009 = vmatpush1.msra.mxu0 0.0
  %1010 = vmatprep.subr.mxu0 0.0
  %1011 = vmatpush1.msra.mxu0 0.0
  %1012 = vmatprep.subr.mxu0 0.0
  %1013 = vmatpush1.msra.mxu0 0.0
  %1014 = vmatprep.subr.mxu0 0.0
  %1015 = vmatpush1.msra.mxu0 0.0
  %1016 = vmatprep.subr.mxu0 0.0
  %1017 = vmatpush1.msra.mxu0 0.0
  %1018 = vmatprep.subr.mxu0 0.0
  %1019 = vmatpush1.msra.mxu0 0.0
  %1020 = vmatprep.subr.mxu0 0.0
  %1021 = vmatpush1.msra.mxu0 0.0
  %1022 = vmatprep.subr.mxu0 0.0
  %1023 = vmatpush1.msra.mxu0 0.0
  %1024 = vmatprep.subr.mxu0 0.0
  %1025 = vmatpush1.msra.mxu0 0.0
  %1026 = vmatprep.subr.mxu0 0.0
  %1027 = vmatpush1.msra.mxu0 0.0
  %1028 = vmatprep.subr.mxu0 0.0
  %1029 = vmatpush1.msra.mxu0 0.0
  %1030 = vmatprep.subr.mxu0 0.0
  %1031 = vmatpush1.msra.mxu0 0.0
  %1032 = vmatprep.mubr.f32.mxu0 0.0
  %1033 = vmatmul.mubr.f32.gmra.mrb[0].mxu0 %v963
  %v1034 = vpop.f32.mrb[0].mxu0
  %v1035 = vadd.f32 0.0, %v1034
  %v1036 = vpop.f32.mrb[0].mxu0
  %v1037 = vadd.f32 0.0, %v1036
  %1038 = vmatprep.mubr.f32.mxu0 0.0
  %1039 = vmatmul.mubr.f32.gmra.mrb[0].mxu0 %v966
  %v1040 = vpop.f32.mrb[0].mxu0
  %v1041 = vadd.f32 0.0, %v1040
  %v1042 = vpop.f32.mrb[0].mxu0
  %v1043 = vadd.f32 0.0, %v1042
  %1044 = vdwg.mxu0
  %s1045 = scalar_lea.vmem %s6, 16
  %v1046 = vld [vmem:[%s1045] sm:$0xff]
  %v1047 = vld [vmem:[%s1045 + $0x8] sm:$0xff]
  %s1048 = scalar_lea.vmem %s6, 32
  %v1049 = vld [vmem:[%s1048] sm:$0xff]
  %v1050 = vld [vmem:[%s1048 + $0x8] sm:$0xff]
  %v1052 = vsel %vm147, %v1049, 0
  %v1055 = vsel %vm147, %v1050, 0
  %1057 = vmatprep.subr.mxu0 %v952
  %1058 = vmatpush1.msra.mxu0 %v953
  %1059 = vmatprep.subr.mxu0 %v947
  %1060 = vmatpush1.msra.mxu0 %v946
  %1061 = vmatprep.subr.mxu0 %v959
  %1062 = vmatpush1.msra.mxu0 %v958
  %1063 = vmatprep.subr.mxu0 0.0
  %1064 = vmatpush1.msra.mxu0 0.0
  %1065 = vmatprep.subr.mxu0 0.0
  %1066 = vmatpush1.msra.mxu0 0.0
  %1067 = vmatprep.subr.mxu0 0.0
  %1068 = vmatpush1.msra.mxu0 0.0
  %1069 = vmatprep.subr.mxu0 0.0
  %1070 = vmatpush1.msra.mxu0 0.0
  %1071 = vmatprep.subr.mxu0 0.0
  %1072 = vmatpush1.msra.mxu0 0.0
  %1073 = vmatprep.subr.mxu0 0.0
  %1074 = vmatpush1.msra.mxu0 0.0
  %1075 = vmatprep.subr.mxu0 0.0
  %1076 = vmatpush1.msra.mxu0 0.0
  %1077 = vmatprep.subr.mxu0 0.0
  %1078 = vmatpush1.msra.mxu0 0.0
  %1079 = vmatprep.subr.mxu0 0.0
  %1080 = vmatpush1.msra.mxu0 0.0
  %1081 = vmatprep.subr.mxu0 0.0
  %1082 = vmatpush1.msra.mxu0 0.0
  %1083 = vmatprep.subr.mxu0 0.0
  %1084 = vmatpush1.msra.mxu0 0.0
  %1085 = vmatprep.subr.mxu0 0.0
  %1086 = vmatpush1.msra.mxu0 0.0
  %1087 = vmatprep.subr.mxu0 0.0
  %1088 = vmatpush1.msra.mxu0 0.0
  %1089 = vmatprep.subr.mxu0 0.0
  %1090 = vmatpush1.msra.mxu0 0.0
  %1091 = vmatprep.subr.mxu0 0.0
  %1092 = vmatpush1.msra.mxu0 0.0
  %1093 = vmatprep.subr.mxu0 0.0
  %1094 = vmatpush1.msra.mxu0 0.0
  %1095 = vmatprep.subr.mxu0 0.0
  %1096 = vmatpush1.msra.mxu0 0.0
  %1097 = vmatprep.subr.mxu0 0.0
  %1098 = vmatpush1.msra.mxu0 0.0
  %1099 = vmatprep.subr.mxu0 0.0
  %1100 = vmatpush1.msra.mxu0 0.0
  %1101 = vmatprep.subr.mxu0 0.0
  %1102 = vmatpush1.msra.mxu0 0.0
  %1103 = vmatprep.subr.mxu0 0.0
  %1104 = vmatpush1.msra.mxu0 0.0
  %1105 = vmatprep.subr.mxu0 0.0
  %1106 = vmatpush1.msra.mxu0 0.0
  %1107 = vmatprep.subr.mxu0 0.0
  %1108 = vmatpush1.msra.mxu0 0.0
  %1109 = vmatprep.subr.mxu0 0.0
  %1110 = vmatpush1.msra.mxu0 0.0
  %1111 = vmatprep.subr.mxu0 0.0
  %1112 = vmatpush1.msra.mxu0 0.0
  %1113 = vmatprep.subr.mxu0 0.0
  %1114 = vmatpush1.msra.mxu0 0.0
  %1115 = vmatprep.subr.mxu0 0.0
  %1116 = vmatpush1.msra.mxu0 0.0
  %1117 = vmatprep.subr.mxu0 0.0
  %1118 = vmatpush1.msra.mxu0 0.0
  %1119 = vmatprep.subr.mxu0 0.0
  %1120 = vmatpush1.msra.mxu0 0.0
  %1121 = vmatprep.mubr.f32.mxu0 0.0
  %1122 = vmatmul.mubr.f32.gmra.mrb[0].mxu0 %v1052
  %v1123 = vpop.f32.mrb[0].mxu0
  %v1124 = vadd.f32 0.0, %v1123
  %v1125 = vpop.f32.mrb[0].mxu0
  %v1126 = vadd.f32 0.0, %v1125
  %1127 = vmatprep.mubr.f32.mxu0 0.0
  %1128 = vmatmul.mubr.f32.gmra.mrb[0].mxu0 %v1055
  %v1129 = vpop.f32.mrb[0].mxu0
  %v1130 = vadd.f32 0.0, %v1129
  %v1131 = vpop.f32.mrb[0].mxu0
  %v1132 = vadd.f32 0.0, %v1131
  %1133 = vdwg.mxu0
  %1134 = vrot.lane.b32.xlu0 %v1035, 10
  %v1135 = vpop.permute.xlu0 %1134
  %1136 = vrot.lane.b32.xlu0 %v1041, 10
  %v1137 = vpop.permute.xlu0 %1136
  %1138 = vrot.lane.b32.xlu0 %v1037, 10
  %v1139 = vpop.permute.xlu0 %1138
  %1140 = vrot.lane.b32.xlu0 %v1043, 10
  %v1141 = vpop.permute.xlu0 %1140
  %v1142 = vsel %vm304, %v1135, %v1139
  %v1143 = vsel %vm304, %v1137, %v1141
  %v1144 = vsel %vm304, %v1139, %v1135
  %v1145 = vsel %vm304, %v1141, %v1137
  %v1147 = vsel %vm147, %v1046, 0
  %v1150 = vsel %vm147, %v1047, 0
  %1152 = vmatprep.subr.mxu0 %v952
  %1153 = vmatpush1.msra.mxu0 %v953
  %1154 = vmatprep.subr.mxu0 %v947
  %1155 = vmatpush1.msra.mxu0 %v946
  %1156 = vmatprep.subr.mxu0 %v959
  %1157 = vmatpush1.msra.mxu0 %v958
  %1158 = vmatprep.subr.mxu0 0.0
  %1159 = vmatpush1.msra.mxu0 0.0
  %1160 = vmatprep.subr.mxu0 0.0
  %1161 = vmatpush1.msra.mxu0 0.0
  %1162 = vmatprep.subr.mxu0 0.0
  %1163 = vmatpush1.msra.mxu0 0.0
  %1164 = vmatprep.subr.mxu0 0.0
  %1165 = vmatpush1.msra.mxu0 0.0
  %1166 = vmatprep.subr.mxu0 0.0
  %1167 = vmatpush1.msra.mxu0 0.0
  %1168 = vmatprep.subr.mxu0 0.0
  %1169 = vmatpush1.msra.mxu0 0.0
  %1170 = vmatprep.subr.mxu0 0.0
  %1171 = vmatpush1.msra.mxu0 0.0
  %1172 = vmatprep.subr.mxu0 0.0
  %1173 = vmatpush1.msra.mxu0 0.0
  %1174 = vmatprep.subr.mxu0 0.0
  %1175 = vmatpush1.msra.mxu0 0.0
  %1176 = vmatprep.subr.mxu0 0.0
  %1177 = vmatpush1.msra.mxu0 0.0
  %1178 = vmatprep.subr.mxu0 0.0
  %1179 = vmatpush1.msra.mxu0 0.0
  %1180 = vmatprep.subr.mxu0 0.0
  %1181 = vmatpush1.msra.mxu0 0.0
  %1182 = vmatprep.subr.mxu0 0.0
  %1183 = vmatpush1.msra.mxu0 0.0
  %1184 = vmatprep.subr.mxu0 0.0
  %1185 = vmatpush1.msra.mxu0 0.0
  %1186 = vmatprep.subr.mxu0 0.0
  %1187 = vmatpush1.msra.mxu0 0.0
  %1188 = vmatprep.subr.mxu0 0.0
  %1189 = vmatpush1.msra.mxu0 0.0
  %1190 = vmatprep.subr.mxu0 0.0
  %1191 = vmatpush1.msra.mxu0 0.0
  %1192 = vmatprep.subr.mxu0 0.0
  %1193 = vmatpush1.msra.mxu0 0.0
  %1194 = vmatprep.subr.mxu0 0.0
  %1195 = vmatpush1.msra.mxu0 0.0
  %1196 = vmatprep.subr.mxu0 0.0
  %1197 = vmatpush1.msra.mxu0 0.0
  %1198 = vmatprep.subr.mxu0 0.0
  %1199 = vmatpush1.msra.mxu0 0.0
  %1200 = vmatprep.subr.mxu0 0.0
  %1201 = vmatpush1.msra.mxu0 0.0
  %1202 = vmatprep.subr.mxu0 0.0
  %1203 = vmatpush1.msra.mxu0 0.0
  %1204 = vmatprep.subr.mxu0 0.0
  %1205 = vmatpush1.msra.mxu0 0.0
  %1206 = vmatprep.subr.mxu0 0.0
  %1207 = vmatpush1.msra.mxu0 0.0
  %1208 = vmatprep.subr.mxu0 0.0
  %1209 = vmatpush1.msra.mxu0 0.0
  %1210 = vmatprep.subr.mxu0 0.0
  %1211 = vmatpush1.msra.mxu0 0.0
  %1212 = vmatprep.subr.mxu0 0.0
  %1213 = vmatpush1.msra.mxu0 0.0
  %1214 = vmatprep.subr.mxu0 0.0
  %1215 = vmatpush1.msra.mxu0 0.0
  %1216 = vmatprep.mubr.f32.mxu0 0.0
  %1217 = vmatmul.mubr.f32.gmra.mrb[0].mxu0 %v1147
  %v1218 = vpop.f32.mrb[0].mxu0
  %v1219 = vadd.f32 %v1144, %v1218
  %v1220 = vpop.f32.mrb[0].mxu0
  %v1221 = vadd.f32 %v1142, %v1220
  %1222 = vmatprep.mubr.f32.mxu0 0.0
  %1223 = vmatmul.mubr.f32.gmra.mrb[0].mxu0 %v1150
  %v1224 = vpop.f32.mrb[0].mxu0
  %v1225 = vadd.f32 %v1145, %v1224
  %v1226 = vpop.f32.mrb[0].mxu0
  %v1227 = vadd.f32 %v1143, %v1226
  %1228 = vdwg.mxu0
  %1229 = vrot.lane.b32.xlu0 %v1124, 118
  %v1230 = vpop.permute.xlu0 %1229
  %1231 = vrot.lane.b32.xlu0 %v1130, 118
  %v1232 = vpop.permute.xlu0 %1231
  %1233 = vrot.lane.b32.xlu0 %v1126, 118
  %v1234 = vpop.permute.xlu0 %1233
  %1235 = vrot.lane.b32.xlu0 %v1132, 118
  %v1236 = vpop.permute.xlu0 %1235
  %v1237 = vsel %vm385, %v1230, %v1234
  %v1238 = vsel %vm385, %v1232, %v1236
  %v1239 = vsel %vm385, %v1234, %v1230
  %v1240 = vsel %vm385, %v1236, %v1232
  %v1241 = vadd.f32 %v1219, %v1237
  %v1242 = vadd.f32 %v1221, %v1239
  %v1243 = vadd.f32 %v1225, %v1238
  %v1244 = vadd.f32 %v1227, %v1240
  %1245 = vst [vmem:[%s8] sm:$0xff] %v1241
  %1246 = vst [vmem:[%s8 + $0x8] sm:$0xff] %v1242
  %1247 = vst [vmem:[%s8 + $0x10] sm:$0xff] %v1243
  %1248 = vst [vmem:[%s8 + $0x18] sm:$0xff] %v1244
  // Predicated region
  $region34: #{ulink_forward.1} parent=0 // pred_check
    _
  $region35: #{ulink_forward.1} parent=0 // pred_check_branch
    %1250 = sbr.rel (0) target = $region37
  $region36: #{ulink_forward.1} parent=0 // pred_region
    _
  $region37: #{ulink_forward.1} parent=0 // pred_fallthru
    _
  // Predicated region
  $region38: #{ulink_forward.1} parent=0 // pred_check
    _
  $region39: #{ulink_forward.1} parent=0 // pred_check_branch
    %1252 = sbr.rel (0) target = $region41
  $region40: #{ulink_forward.1} parent=0 // pred_region
    _
  $region41: #{ulink_forward.1} parent=0 // pred_fallthru
    _

</llo_original>
